<compile_context>
chip_gen: v7x
topology: tpu7x:2x2x1
jax: 0.10.0
libtpu: 0.0.40
codegen_flags: <defaults>
</compile_context>

<pallas_src>
import jax
import jax.numpy as jnp
from jax.experimental import pallas as pl
from jax.experimental.pallas import tpu as pltpu


def _encoder_kernel(x_ref, w1_ref, b1_ref, w2_ref, b2_ref,
                    w3_ref, b3_ref, w4_ref, b4_ref, out_ref):
    """One grid step processes a (tn, 8) slab of points for one (batch, split).

    The output block is resident across the innermost ('arbitrary') point-tile
    axis and acts as a running max accumulator.
    """
    nt = pl.program_id(2)

    # bf16 operands into the MXU, f32 accumulation; bias + ReLU in f32.
    h = x_ref[0]                                                        # (tn, 8) bf16
    h = jnp.dot(h, w1_ref[...], preferred_element_type=jnp.float32) + b1_ref[...]
    h = jnp.maximum(h, 0.0).astype(jnp.bfloat16)                        # (tn, 64)
    h = jnp.dot(h, w2_ref[...], preferred_element_type=jnp.float32) + b2_ref[...]
    h = jnp.maximum(h, 0.0).astype(jnp.bfloat16)                        # (tn, 128)
    h = jnp.dot(h, w3_ref[...], preferred_element_type=jnp.float32) + b3_ref[...]
    h = jnp.maximum(h, 0.0).astype(jnp.bfloat16)                        # (tn, 256)
    h = jnp.dot(h, w4_ref[...], preferred_element_type=jnp.float32) + b4_ref[...]
    h = jnp.maximum(h, 0.0)                                             # (tn, E) f32

    tn, E = h.shape
    # Sublane-aligned partial max: the reshape splits the sublane axis into
    # whole (8, E) vreg slabs, so the reduce is pure VPU elementwise max.
    m8 = jnp.max(h.reshape(tn // 8, 8, E), axis=0)                      # (8, E)

    @pl.when(nt == 0)
    def _():
        # All accumulated values are post-ReLU (>= 0), so zero-init is exact.
        out_ref[0] = jnp.zeros(out_ref.shape[1:], jnp.float32)

    out_ref[0] = jnp.maximum(out_ref[0], m8)


def point_cloud_encoder(x, params, *, tn=512, point_splits=1):
    """x: (B, N, 3) float32.  Returns (B, embedding_dim) float32.

    tn           : points per grid step (sweep 512-2048).
    point_splits : extra 'parallel' grid axis over the point dim; useful on
                   v7x megacore when B alone gives too little parallel work.
    """
    B, N, C = x.shape
    assert C == 3
    (w1, b1), (w2, b2), (w3, b3), (w4, b4) = params
    E = w4.shape[1]

    # Pad embedding dim to a lane-dense multiple of 128 (zero cols -> ReLU(0)=0,
    # sliced off below).  No-op when E is already aligned.
    E_pad = ((E + 127) // 128) * 128
    if E_pad != E:
        w4 = jnp.pad(w4, ((0, 0), (0, E_pad - E)))
        b4 = jnp.pad(b4, ((0, 0), (0, E_pad - E)))

    # Pad N (replicating the last point; neutral under max-pool) so it divides
    # evenly into tiles.  No-op when already divisible.
    tile = tn * point_splits
    N_pad = ((N + tile - 1) // tile) * tile
    if N_pad != N:
        x = jnp.pad(x, ((0, 0), (0, N_pad - N), (0, 0)), mode="edge")
    nts = N_pad // tile                    # point tiles per split

    # Pad xyz channels 3 -> 8 (zeros) and cast streaming input to bf16.
    x_p = jnp.pad(x, ((0, 0), (0, 0), (0, 5))).astype(jnp.bfloat16)     # (B, N_pad, 8)
    w1_p = jnp.pad(w1, ((0, 5), (0, 0)))                                # (8, 64)

    bf16 = lambda w: w.astype(jnp.bfloat16)
    full = lambda shape: pl.BlockSpec(shape, lambda b, s, nt: (0, 0))

    grid_spec = pltpu.PrefetchScalarGridSpec(
        num_scalar_prefetch=0,
        grid=(B, point_splits, nts),
        in_specs=[
            pl.BlockSpec((1, tn, 8), lambda b, s, nt: (b, s * nts + nt, 0)),  # x tile
            full(w1_p.shape), full(b1.shape),
            full(w2.shape), full(b2.shape),
            full(w3.shape), full(b3.shape),
            full(w4.shape), full(b4.shape),
        ],
        # (1, 8, E_pad) output slab per (batch, split), resident across the
        # point-tile (reduction) axis.
        out_specs=pl.BlockSpec((1, 8, E_pad), lambda b, s, nt: (b, s, 0)),
    )

    out = pl.pallas_call(
        _encoder_kernel,
        out_shape=jax.ShapeDtypeStruct((B, 8 * point_splits, E_pad), jnp.float32),
        grid_spec=grid_spec,
        compiler_params=pltpu.CompilerParams(
            dimension_semantics=("parallel", "parallel", "arbitrary")),
    )(x_p, bf16(w1_p), b1, bf16(w2), b2, bf16(w3), b3, bf16(w4), b4)

    # Final 8*point_splits -> 1 max reduce (tiny) done outside the kernel.
    return jnp.max(out, axis=1)[:, :E]                                  # (B, E)


# ----------------------------- parameter setup ------------------------------

def _fold_bn(w, b_conv, gamma, beta, mean, var, eps=1e-5):
    """Fold eval-mode BatchNorm1d into a 1x1 conv: returns (W_eff, b_eff).

    w       : (Cin, Cout)   -- conv weight, already transposed to Cin x Cout
    b_conv  : (Cout,)
    """
    scale = gamma / jnp.sqrt(var + eps)                                 # (Cout,)
    w_eff = w * scale[None, :]
    b_eff = (b_conv - mean) * scale + beta
    return w_eff.astype(jnp.float32), b_eff[None, :].astype(jnp.float32)  # b as (1, Cout)


def make_params(key, embedding_dim=256):
    dims = [3, 64, 128, 256, embedding_dim]
    params = []
    for i in range(4):
        cin, cout = dims[i], dims[i + 1]
        key, kw, kb, kg, kbeta, km, kv = jax.random.split(key, 7)
        w = 0.1 * jax.random.normal(kw, (cin, cout), jnp.float32)        # conv weight (Cin,Cout)
        b = 0.05 * jax.random.normal(kb, (cout,), jnp.float32)           # conv bias
        gamma = 1.0 + 0.1 * jax.random.normal(kg, (cout,), jnp.float32)
        beta = 0.05 * jax.random.normal(kbeta, (cout,), jnp.float32)
        mean = 0.02 * jax.random.normal(km, (cout,), jnp.float32)        # running_mean
        var = 1.0 + 0.1 * jax.random.uniform(kv, (cout,), jnp.float32)   # running_var
        params.append(_fold_bn(w, b, gamma, beta, mean, var))
    return params


def reference_forward(x, params):
    """Pure-JAX f32 reference matching the PyTorch eval-mode forward."""
    h = x.astype(jnp.float32)                                           # (B, N, 3)
    for (w, b) in params:
        h = jnp.maximum(jnp.einsum("bnc,cd->bnd", h, w) + b[None, :, :], 0.0)
    return jnp.max(h, axis=1)                                           # (B, E)


if __name__ == "__main__":
    B, N, E = 2, 2048, 256
    key = jax.random.PRNGKey(0)
    kx, kp = jax.random.split(key)

    x = jax.random.normal(kx, (B, N, 3), jnp.float32)                   # (batch, points, xyz)
    params = make_params(kp, embedding_dim=E)

    out = point_cloud_encoder(x, params, tn=512, point_splits=2)
    out = jax.block_until_ready(out)

    ref = reference_forward(x, params)
    assert out.shape == (B, E)
    # bf16 MXU operands with f32 accumulation vs pure-f32 reference: loose tol.
    assert jnp.allclose(out, ref, atol=2e-2, rtol=2e-2), "mismatch vs reference"

    print("KERNEL_OK")
</pallas_src>

<mosaic_0001>
module attributes {stable_mosaic.version = 11 : i64} {
  func.func @_encoder_kernel(%arg0: i32, %arg1: i32, %arg2: i32, %arg3: memref<1x512x8xbf16, #tpu.memory_space<vmem>>, %arg4: memref<8x64xbf16, #tpu.memory_space<vmem>>, %arg5: memref<1x64xf32, #tpu.memory_space<vmem>>, %arg6: memref<64x128xbf16, #tpu.memory_space<vmem>>, %arg7: memref<1x128xf32, #tpu.memory_space<vmem>>, %arg8: memref<128x256xbf16, #tpu.memory_space<vmem>>, %arg9: memref<1x256xf32, #tpu.memory_space<vmem>>, %arg10: memref<256x256xbf16, #tpu.memory_space<vmem>>, %arg11: memref<1x256xf32, #tpu.memory_space<vmem>>, %arg12: memref<1x8x256xf32, #tpu.memory_space<vmem>>) attributes {dimension_semantics = [#tpu.dimension_semantics<parallel>, #tpu.dimension_semantics<parallel>, #tpu.dimension_semantics<arbitrary>], iteration_bounds = array<i64: 2, 2, 2>, scalar_prefetch = 0 : i64, scratch_operands = 0 : i64, tpu.core_type = #tpu.core_type<tc>, window_params = [{transform_indices = @transform_0, window_bounds = array<i64: 1, 512, 8>}, {pipeline_mode = #tpu.pipeline_mode<synchronous>, transform_indices = @transform_1, window_bounds = array<i64: 8, 64>}, {pipeline_mode = #tpu.pipeline_mode<synchronous>, transform_indices = @transform_2, window_bounds = array<i64: 1, 64>}, {pipeline_mode = #tpu.pipeline_mode<synchronous>, transform_indices = @transform_3, window_bounds = array<i64: 64, 128>}, {pipeline_mode = #tpu.pipeline_mode<synchronous>, transform_indices = @transform_4, window_bounds = array<i64: 1, 128>}, {pipeline_mode = #tpu.pipeline_mode<synchronous>, transform_indices = @transform_5, window_bounds = array<i64: 128, 256>}, {pipeline_mode = #tpu.pipeline_mode<synchronous>, transform_indices = @transform_6, window_bounds = array<i64: 1, 256>}, {pipeline_mode = #tpu.pipeline_mode<synchronous>, transform_indices = @transform_7, window_bounds = array<i64: 256, 256>}, {pipeline_mode = #tpu.pipeline_mode<synchronous>, transform_indices = @transform_8, window_bounds = array<i64: 1, 256>}, {transform_indices = @transform_9, window_bounds = array<i64: 1, 8, 256>}]} {
    %c0 = arith.constant 0 : index
    %c0_0 = arith.constant 0 : index
    %c0_1 = arith.constant 0 : index
    %0 = vector.load %arg3[%c0, %c0_0, %c0_1] : memref<1x512x8xbf16, #tpu.memory_space<vmem>>, vector<1x512x8xbf16>
    %1 = vector.shape_cast %0 : vector<1x512x8xbf16> to vector<512x8xbf16>
    %c0_2 = arith.constant 0 : index
    %c0_3 = arith.constant 0 : index
    %2 = vector.load %arg4[%c0_2, %c0_3] : memref<8x64xbf16, #tpu.memory_space<vmem>>, vector<8x64xbf16>
    %cst = arith.constant dense<0.000000e+00> : vector<512x64xf32>
    %3 = tpu.matmul %1, %2, %cst {dimension_numbers = #tpu.dot_dimension_numbers<[1], [0], [0], [1], [0, 0, 1, 1], [], []>} : vector<512x8xbf16>, vector<8x64xbf16>, vector<512x64xf32> -> vector<512x64xf32>
    %c0_4 = arith.constant 0 : index
    %c0_5 = arith.constant 0 : index
    %4 = vector.load %arg5[%c0_4, %c0_5] : memref<1x64xf32, #tpu.memory_space<vmem>>, vector<1x64xf32>
    %5 = vector.broadcast %4 : vector<1x64xf32> to vector<512x64xf32>
    %6 = arith.addf %3, %5 : vector<512x64xf32>
    %cst_6 = arith.constant 0.000000e+00 : f32
    %7 = vector.broadcast %cst_6 : f32 to vector<512x64xf32>
    %8 = arith.maximumf %6, %7 : vector<512x64xf32>
    %9 = arith.truncf %8 : vector<512x64xf32> to vector<512x64xbf16>
    %c0_7 = arith.constant 0 : index
    %c0_8 = arith.constant 0 : index
    %10 = vector.load %arg6[%c0_7, %c0_8] : memref<64x128xbf16, #tpu.memory_space<vmem>>, vector<64x128xbf16>
    %cst_9 = arith.constant dense<0.000000e+00> : vector<512x128xf32>
    %11 = tpu.matmul %9, %10, %cst_9 {dimension_numbers = #tpu.dot_dimension_numbers<[1], [0], [0], [1], [0, 0, 1, 1], [], []>} : vector<512x64xbf16>, vector<64x128xbf16>, vector<512x128xf32> -> vector<512x128xf32>
    %c0_10 = arith.constant 0 : index
    %c0_11 = arith.constant 0 : index
    %12 = vector.load %arg7[%c0_10, %c0_11] : memref<1x128xf32, #tpu.memory_space<vmem>>, vector<1x128xf32>
    %13 = vector.broadcast %12 : vector<1x128xf32> to vector<512x128xf32>
    %14 = arith.addf %11, %13 : vector<512x128xf32>
    %cst_12 = arith.constant 0.000000e+00 : f32
    %15 = vector.broadcast %cst_12 : f32 to vector<512x128xf32>
    %16 = arith.maximumf %14, %15 : vector<512x128xf32>
    %17 = arith.truncf %16 : vector<512x128xf32> to vector<512x128xbf16>
    %c0_13 = arith.constant 0 : index
    %c0_14 = arith.constant 0 : index
    %18 = vector.load %arg8[%c0_13, %c0_14] : memref<128x256xbf16, #tpu.memory_space<vmem>>, vector<128x256xbf16>
    %cst_15 = arith.constant dense<0.000000e+00> : vector<512x256xf32>
    %19 = tpu.matmul %17, %18, %cst_15 {dimension_numbers = #tpu.dot_dimension_numbers<[1], [0], [0], [1], [0, 0, 1, 1], [], []>} : vector<512x128xbf16>, vector<128x256xbf16>, vector<512x256xf32> -> vector<512x256xf32>
    %c0_16 = arith.constant 0 : index
    %c0_17 = arith.constant 0 : index
    %20 = vector.load %arg9[%c0_16, %c0_17] : memref<1x256xf32, #tpu.memory_space<vmem>>, vector<1x256xf32>
    %21 = vector.broadcast %20 : vector<1x256xf32> to vector<512x256xf32>
    %22 = arith.addf %19, %21 : vector<512x256xf32>
    %cst_18 = arith.constant 0.000000e+00 : f32
    %23 = vector.broadcast %cst_18 : f32 to vector<512x256xf32>
    %24 = arith.maximumf %22, %23 : vector<512x256xf32>
    %25 = arith.truncf %24 : vector<512x256xf32> to vector<512x256xbf16>
    %c0_19 = arith.constant 0 : index
    %c0_20 = arith.constant 0 : index
    %26 = vector.load %arg10[%c0_19, %c0_20] : memref<256x256xbf16, #tpu.memory_space<vmem>>, vector<256x256xbf16>
    %cst_21 = arith.constant dense<0.000000e+00> : vector<512x256xf32>
    %27 = tpu.matmul %25, %26, %cst_21 {dimension_numbers = #tpu.dot_dimension_numbers<[1], [0], [0], [1], [0, 0, 1, 1], [], []>} : vector<512x256xbf16>, vector<256x256xbf16>, vector<512x256xf32> -> vector<512x256xf32>
    %c0_22 = arith.constant 0 : index
    %c0_23 = arith.constant 0 : index
    %28 = vector.load %arg11[%c0_22, %c0_23] : memref<1x256xf32, #tpu.memory_space<vmem>>, vector<1x256xf32>
    %29 = vector.broadcast %28 : vector<1x256xf32> to vector<512x256xf32>
    %30 = arith.addf %27, %29 : vector<512x256xf32>
    %cst_24 = arith.constant 0.000000e+00 : f32
    %31 = vector.broadcast %cst_24 : f32 to vector<512x256xf32>
    %32 = arith.maximumf %30, %31 : vector<512x256xf32>
    %33 = vector.shape_cast %32 : vector<512x256xf32> to vector<64x8x256xf32>
    %cst_25 = arith.constant dense<0xFF800000> : vector<8x256xf32>
    %34 = vector.multi_reduction <maximumf>, %33, %cst_25 [0] : vector<64x8x256xf32> to vector<8x256xf32>
    %c0_i32 = arith.constant 0 : i32
    %35 = arith.cmpi eq, %arg2, %c0_i32 : i32
    %36 = arith.extui %35 : i1 to i32
    %c0_i32_26 = arith.constant 0 : i32
    %37 = arith.cmpi ne, %36, %c0_i32_26 : i32
    scf.if %37 {
      %cst_33 = arith.constant 0.000000e+00 : f32
      %44 = vector.broadcast %cst_33 : f32 to vector<8x256xf32>
      %c0_34 = arith.constant 0 : index
      %c0_35 = arith.constant 0 : index
      %c0_36 = arith.constant 0 : index
      %45 = vector.load %arg12[%c0_34, %c0_35, %c0_36] : memref<1x8x256xf32, #tpu.memory_space<vmem>>, vector<1x8x256xf32>
      %46 = vector.shape_cast %45 : vector<1x8x256xf32> to vector<8x256xf32>
      %47 = vector.shape_cast %44 : vector<8x256xf32> to vector<1x8x256xf32>
      tpu.vector_store %arg12[%c0_34, %c0_35, %c0_36], %47 {strides = array<i32>} : memref<1x8x256xf32, #tpu.memory_space<vmem>>, vector<1x8x256xf32>,
    } else {
    }
    %c0_27 = arith.constant 0 : index
    %c0_28 = arith.constant 0 : index
    %c0_29 = arith.constant 0 : index
    %38 = vector.load %arg12[%c0_27, %c0_28, %c0_29] : memref<1x8x256xf32, #tpu.memory_space<vmem>>, vector<1x8x256xf32>
    %39 = vector.shape_cast %38 : vector<1x8x256xf32> to vector<8x256xf32>
    %40 = arith.maximumf %39, %34 : vector<8x256xf32>
    %c0_30 = arith.constant 0 : index
    %c0_31 = arith.constant 0 : index
    %c0_32 = arith.constant 0 : index
    %41 = vector.load %arg12[%c0_30, %c0_31, %c0_32] : memref<1x8x256xf32, #tpu.memory_space<vmem>>, vector<1x8x256xf32>
    %42 = vector.shape_cast %41 : vector<1x8x256xf32> to vector<8x256xf32>
    %43 = vector.shape_cast %40 : vector<8x256xf32> to vector<1x8x256xf32>
    tpu.vector_store %arg12[%c0_30, %c0_31, %c0_32], %43 {strides = array<i32>} : memref<1x8x256xf32, #tpu.memory_space<vmem>>, vector<1x8x256xf32>,
    return
  }
  func.func @transform_0(%arg0: i32, %arg1: i32, %arg2: i32) -> (i32, i32, i32) {
    %c2_i32 = arith.constant 2 : i32
    %0 = arith.muli %arg1, %c2_i32 : i32
    %1 = arith.addi %0, %arg2 : i32
    %c0_i32 = arith.constant 0 : i32
    %c0_i32_0 = arith.constant 0 : i32
    return %arg0, %1, %c0_i32 : i32, i32, i32
  }
  func.func @transform_1(%arg0: i32, %arg1: i32, %arg2: i32) -> (i32, i32) {
    %c0_i32 = arith.constant 0 : i32
    %c0_i32_0 = arith.constant 0 : i32
    %c0_i32_1 = arith.constant 0 : i32
    return %c0_i32, %c0_i32_0 : i32, i32
  }
  func.func @transform_2(%arg0: i32, %arg1: i32, %arg2: i32) -> (i32, i32) {
    %c0_i32 = arith.constant 0 : i32
    %c0_i32_0 = arith.constant 0 : i32
    %c0_i32_1 = arith.constant 0 : i32
    return %c0_i32, %c0_i32_0 : i32, i32
  }
  func.func @transform_3(%arg0: i32, %arg1: i32, %arg2: i32) -> (i32, i32) {
    %c0_i32 = arith.constant 0 : i32
    %c0_i32_0 = arith.constant 0 : i32
    %c0_i32_1 = arith.constant 0 : i32
    return %c0_i32, %c0_i32_0 : i32, i32
  }
  func.func @transform_4(%arg0: i32, %arg1: i32, %arg2: i32) -> (i32, i32) {
    %c0_i32 = arith.constant 0 : i32
    %c0_i32_0 = arith.constant 0 : i32
    %c0_i32_1 = arith.constant 0 : i32
    return %c0_i32, %c0_i32_0 : i32, i32
  }
  func.func @transform_5(%arg0: i32, %arg1: i32, %arg2: i32) -> (i32, i32) {
    %c0_i32 = arith.constant 0 : i32
    %c0_i32_0 = arith.constant 0 : i32
    %c0_i32_1 = arith.constant 0 : i32
    return %c0_i32, %c0_i32_0 : i32, i32
  }
  func.func @transform_6(%arg0: i32, %arg1: i32, %arg2: i32) -> (i32, i32) {
    %c0_i32 = arith.constant 0 : i32
    %c0_i32_0 = arith.constant 0 : i32
    %c0_i32_1 = arith.constant 0 : i32
    return %c0_i32, %c0_i32_0 : i32, i32
  }
  func.func @transform_7(%arg0: i32, %arg1: i32, %arg2: i32) -> (i32, i32) {
    %c0_i32 = arith.constant 0 : i32
    %c0_i32_0 = arith.constant 0 : i32
    %c0_i32_1 = arith.constant 0 : i32
    return %c0_i32, %c0_i32_0 : i32, i32
  }
  func.func @transform_8(%arg0: i32, %arg1: i32, %arg2: i32) -> (i32, i32) {
    %c0_i32 = arith.constant 0 : i32
    %c0_i32_0 = arith.constant 0 : i32
    %c0_i32_1 = arith.constant 0 : i32
    return %c0_i32, %c0_i32_0 : i32, i32
  }
  func.func @transform_9(%arg0: i32, %arg1: i32, %arg2: i32) -> (i32, i32, i32) {
    %c0_i32 = arith.constant 0 : i32
    %c0_i32_0 = arith.constant 0 : i32
    return %arg0, %arg1, %c0_i32 : i32, i32, i32
  }
}

</mosaic_0001>

<llo_original>
// kernel: tpu_custom_call.1
$region0: #{tpu_custom_call.1}
  #allocation0 [shape = 'u32[]', space=smem, size = 0x4, offset = 0x4, fixed_abs, tag = 'smem constant byte address 0x4 - core index']
  #allocation1 [shape = 'u32[144,128]{1,0:T(1,128)}', space=vmem, size = 0x12000, scoped, tag = 'internal scratch']
  %s0 = inlined_call_operand.vmem [shape: bf16[2,2048,8], index: 0, kind: input, shape index: {}]
  %s1 = inlined_call_operand.vmem [shape: bf16[8,64], index: 1, kind: input, shape index: {}]
  %s2 = inlined_call_operand.vmem [shape: f32[1,64], index: 2, kind: input, shape index: {}]
  %s3 = inlined_call_operand.vmem [shape: bf16[64,128], index: 3, kind: input, shape index: {}]
  %s4 = inlined_call_operand.vmem [shape: f32[1,128], index: 4, kind: input, shape index: {}]
  %s5 = inlined_call_operand.vmem [shape: bf16[128,256], index: 5, kind: input, shape index: {}]
  %s6 = inlined_call_operand.vmem [shape: f32[1,256], index: 6, kind: input, shape index: {}]
  %s7 = inlined_call_operand.vmem [shape: bf16[256,256], index: 7, kind: input, shape index: {}]
  %s8 = inlined_call_operand.vmem [shape: f32[1,256], index: 8, kind: input, shape index: {}]
  %s9 = inlined_call_operand.hbm [shape: f32[2,16,256], index: 9, kind: output, shape index: {}]
  %s10 = sld [smem:[#allocation0]]
  $region73: #{tpu_custom_call.1} parent=0
    _
  %s12 = ssub.s32 1, %s10
  %s13 = scalar_select 0, %s12, %s10
  $region1: #{tpu_custom_call.1} parent=0
    #allocation2 [shape = 'u8[16384]{0}', space=vmem, size = 0x4000, scoped, tag = 'output window, operand 0']
    #allocation3 [shape = 's32[2]{0}', space=sflag, size = 0x8, scoped, tag = 'scoped memory for tpu_custom_call.1']
    %14 = vsyncpa [#allocation3], 0
    %s15 = scalar_lea.sflag [#allocation3], 1
    %16 = vsyncpa %s15, 0
    loop: start=0, step=1, limit=10
    $region2: #{tpu_custom_call.1} parent=1 // loop_pre_header
      _
    $region3: #{tpu_custom_call.1} parent=1 // loop_header
      %s18 = sphi 0, %s22
      %p19 = scmp.ge.s32.totalorder %s18, 10
      %s25 = sphi 0, %s44
      %s26 = sphi 0, %s40
      %s27 = sphi 0, %s36
      %s28 = sphi 0, %s25
      %s29 = sphi 0, %s26
      %s30 = sphi 0, %s27
      %s31 = sphi 0, %s28
      %s32 = sphi 0, %s29
      %s33 = sphi 0, %s30
      %s53 = sphi 0, %s55
      %s56 = sphi 0, %s53
      %s57 = sphi 0, %s56
      %s73 = sphi 0, %s57
      %s77 = sphi 0, %s77
      %s79 = sphi 0, %s77
      %s80 = sphi 0, %s79
      %s94 = sphi 0, %s80
      %s98 = sphi 0, %s98
      %s100 = sphi 0, %s98
      %s101 = sphi 0, %s100
      %s115 = sphi 0, %s101
      %s119 = sphi 0, %s119
      %s121 = sphi 0, %s119
      %s122 = sphi 0, %s121
      %s136 = sphi 0, %s122
      %s140 = sphi 0, %s140
      %s142 = sphi 0, %s140
      %s143 = sphi 0, %s142
      %s157 = sphi 0, %s143
      %s161 = sphi 0, %s161
      %s163 = sphi 0, %s161
      %s164 = sphi 0, %s163
      %s178 = sphi 0, %s164
      %s182 = sphi 0, %s182
      %s184 = sphi 0, %s182
      %s185 = sphi 0, %s184
      %s199 = sphi 0, %s185
      %s203 = sphi 0, %s203
      %s205 = sphi 0, %s203
      %s206 = sphi 0, %s205
      %s220 = sphi 0, %s206
      %s224 = sphi 0, %s224
      %s226 = sphi 0, %s224
      %s227 = sphi 0, %s226
      %s241 = sphi 0, %s227
      %s249 = sphi 0, %s251
      %s252 = sphi 0, %s249
      %s253 = sphi 0, %s252
      %s269 = sphi 0, %s253
    $region4: #{tpu_custom_call.1} parent=1 // loop_header_branch
      %21 = sbr.rel (%p19) target = $region8
    $region5: #{tpu_custom_call.1} parent=1 // loop_body
      %s23 = ssub.s32 %s18, 1
      %s24 = ssub.s32 %s18, 2
      %s34 = sadd.s32 1, %s27
      %p35 = scmp.ge.s32.totalorder %s34, 2
      %s36 = scalar_select %p35, 0, %s34
      %s37 = sadd.s32 1, %s26
      %s38 = scalar_select %p35, %s37, %s26
      %p39 = scmp.ge.s32.totalorder %s38, 2
      %s40 = scalar_select %p39, 0, %s38
      %s41 = sadd.s32 1, %s25
      %s42 = scalar_select %p39, %s41, %s25
      %p43 = scmp.ge.s32.totalorder %s42, 2
      %s44 = scalar_select %p43, 0, %s42
      %s45 = smul.u32 %s26, 2
      %s46 = sadd.s32 %s45, %s27
      %s47 = smul.u32 %s40, 2
      %s48 = sadd.s32 %s47, %s36
      %s49 = ssub.s32 %s25, %s44
      %s50 = ssub.s32 %s46, %s48
      %s51 = sor.u32 %s49, %s50
      %p52 = scmp.eq.s32.totalorder %s51, 0
      %s54 = sadd.s32 %s53, 1
      %s55 = scalar_select %p52, %s53, %s54
      %p58 = pneg %p52
      %p59 = scmp.eq.s32.totalorder %s18, 7
      %p60 = por %p58, %p59
      %p61 = scmp.ne.s32.totalorder %s53, %s56
      %p62 = scmp.eq.s32.totalorder %s18, 0
      %p63 = por %p61, %p62
      %p64 = scmp.ne.s32.totalorder %s53, %s56
      %p65 = scmp.eq.s32.totalorder %s23, 7
      %p66 = por %p64, %p65
      %p67 = scmp.ne.s32.totalorder %s56, %s57
      %p68 = scmp.eq.s32.totalorder %s23, 0
      %p69 = por %p67, %p68
      %p70 = scmp.ne.s32.totalorder %s56, %s57
      %p71 = scmp.eq.s32.totalorder %s24, 7
      %p72 = por %p70, %p71
      %p74 = scmp.ne.s32.totalorder %s57, %s73
      %p75 = scmp.eq.s32.totalorder %s24, 0
      %p76 = por %p74, %p75
      %s78 = sadd.s32 %s77, 1
      %p81 = scmp.eq.s32.totalorder %s18, 7
      %p82 = scmp.ne.s32.totalorder %s77, %s79
      %p83 = scmp.eq.s32.totalorder %s18, 0
      %p84 = por %p82, %p83
      %p85 = scmp.ne.s32.totalorder %s77, %s79
      %p86 = scmp.eq.s32.totalorder %s23, 7
      %p87 = por %p85, %p86
      %p88 = scmp.ne.s32.totalorder %s79, %s80
      %p89 = scmp.eq.s32.totalorder %s23, 0
      %p90 = por %p88, %p89
      %p91 = scmp.ne.s32.totalorder %s79, %s80
      %p92 = scmp.eq.s32.totalorder %s24, 7
      %p93 = por %p91, %p92
      %p95 = scmp.ne.s32.totalorder %s80, %s94
      %p96 = scmp.eq.s32.totalorder %s24, 0
      %p97 = por %p95, %p96
      %s99 = sadd.s32 %s98, 1
      %p102 = scmp.eq.s32.totalorder %s18, 7
      %p103 = scmp.ne.s32.totalorder %s98, %s100
      %p104 = scmp.eq.s32.totalorder %s18, 0
      %p105 = por %p103, %p104
      %p106 = scmp.ne.s32.totalorder %s98, %s100
      %p107 = scmp.eq.s32.totalorder %s23, 7
      %p108 = por %p106, %p107
      %p109 = scmp.ne.s32.totalorder %s100, %s101
      %p110 = scmp.eq.s32.totalorder %s23, 0
      %p111 = por %p109, %p110
      %p112 = scmp.ne.s32.totalorder %s100, %s101
      %p113 = scmp.eq.s32.totalorder %s24, 7
      %p114 = por %p112, %p113
      %p116 = scmp.ne.s32.totalorder %s101, %s115
      %p117 = scmp.eq.s32.totalorder %s24, 0
      %p118 = por %p116, %p117
      %s120 = sadd.s32 %s119, 1
      %p123 = scmp.eq.s32.totalorder %s18, 7
      %p124 = scmp.ne.s32.totalorder %s119, %s121
      %p125 = scmp.eq.s32.totalorder %s18, 0
      %p126 = por %p124, %p125
      %p127 = scmp.ne.s32.totalorder %s119, %s121
      %p128 = scmp.eq.s32.totalorder %s23, 7
      %p129 = por %p127, %p128
      %p130 = scmp.ne.s32.totalorder %s121, %s122
      %p131 = scmp.eq.s32.totalorder %s23, 0
      %p132 = por %p130, %p131
      %p133 = scmp.ne.s32.totalorder %s121, %s122
      %p134 = scmp.eq.s32.totalorder %s24, 7
      %p135 = por %p133, %p134
      %p137 = scmp.ne.s32.totalorder %s122, %s136
      %p138 = scmp.eq.s32.totalorder %s24, 0
      %p139 = por %p137, %p138
      %s141 = sadd.s32 %s140, 1
      %p144 = scmp.eq.s32.totalorder %s18, 7
      %p145 = scmp.ne.s32.totalorder %s140, %s142
      %p146 = scmp.eq.s32.totalorder %s18, 0
      %p147 = por %p145, %p146
      %p148 = scmp.ne.s32.totalorder %s140, %s142
      %p149 = scmp.eq.s32.totalorder %s23, 7
      %p150 = por %p148, %p149
      %p151 = scmp.ne.s32.totalorder %s142, %s143
      %p152 = scmp.eq.s32.totalorder %s23, 0
      %p153 = por %p151, %p152
      %p154 = scmp.ne.s32.totalorder %s142, %s143
      %p155 = scmp.eq.s32.totalorder %s24, 7
      %p156 = por %p154, %p155
      %p158 = scmp.ne.s32.totalorder %s143, %s157
      %p159 = scmp.eq.s32.totalorder %s24, 0
      %p160 = por %p158, %p159
      %s162 = sadd.s32 %s161, 1
      %p165 = scmp.eq.s32.totalorder %s18, 7
      %p166 = scmp.ne.s32.totalorder %s161, %s163
      %p167 = scmp.eq.s32.totalorder %s18, 0
      %p168 = por %p166, %p167
      %p169 = scmp.ne.s32.totalorder %s161, %s163
      %p170 = scmp.eq.s32.totalorder %s23, 7
      %p171 = por %p169, %p170
      %p172 = scmp.ne.s32.totalorder %s163, %s164
      %p173 = scmp.eq.s32.totalorder %s23, 0
      %p174 = por %p172, %p173
      %p175 = scmp.ne.s32.totalorder %s163, %s164
      %p176 = scmp.eq.s32.totalorder %s24, 7
      %p177 = por %p175, %p176
      %p179 = scmp.ne.s32.totalorder %s164, %s178
      %p180 = scmp.eq.s32.totalorder %s24, 0
      %p181 = por %p179, %p180
      %s183 = sadd.s32 %s182, 1
      %p186 = scmp.eq.s32.totalorder %s18, 7
      %p187 = scmp.ne.s32.totalorder %s182, %s184
      %p188 = scmp.eq.s32.totalorder %s18, 0
      %p189 = por %p187, %p188
      %p190 = scmp.ne.s32.totalorder %s182, %s184
      %p191 = scmp.eq.s32.totalorder %s23, 7
      %p192 = por %p190, %p191
      %p193 = scmp.ne.s32.totalorder %s184, %s185
      %p194 = scmp.eq.s32.totalorder %s23, 0
      %p195 = por %p193, %p194
      %p196 = scmp.ne.s32.totalorder %s184, %s185
      %p197 = scmp.eq.s32.totalorder %s24, 7
      %p198 = por %p196, %p197
      %p200 = scmp.ne.s32.totalorder %s185, %s199
      %p201 = scmp.eq.s32.totalorder %s24, 0
      %p202 = por %p200, %p201
      %s204 = sadd.s32 %s203, 1
      %p207 = scmp.eq.s32.totalorder %s18, 7
      %p208 = scmp.ne.s32.totalorder %s203, %s205
      %p209 = scmp.eq.s32.totalorder %s18, 0
      %p210 = por %p208, %p209
      %p211 = scmp.ne.s32.totalorder %s203, %s205
      %p212 = scmp.eq.s32.totalorder %s23, 7
      %p213 = por %p211, %p212
      %p214 = scmp.ne.s32.totalorder %s205, %s206
      %p215 = scmp.eq.s32.totalorder %s23, 0
      %p216 = por %p214, %p215
      %p217 = scmp.ne.s32.totalorder %s205, %s206
      %p218 = scmp.eq.s32.totalorder %s24, 7
      %p219 = por %p217, %p218
      %p221 = scmp.ne.s32.totalorder %s206, %s220
      %p222 = scmp.eq.s32.totalorder %s24, 0
      %p223 = por %p221, %p222
      %s225 = sadd.s32 %s224, 1
      %p228 = scmp.eq.s32.totalorder %s18, 7
      %p229 = scmp.ne.s32.totalorder %s224, %s226
      %p230 = scmp.eq.s32.totalorder %s18, 0
      %p231 = por %p229, %p230
      %p232 = scmp.ne.s32.totalorder %s224, %s226
      %p233 = scmp.eq.s32.totalorder %s23, 7
      %p234 = por %p232, %p233
      %p235 = scmp.ne.s32.totalorder %s226, %s227
      %p236 = scmp.eq.s32.totalorder %s23, 0
      %p237 = por %p235, %p236
      %p238 = scmp.ne.s32.totalorder %s226, %s227
      %p239 = scmp.eq.s32.totalorder %s24, 7
      %p240 = por %p238, %p239
      %p242 = scmp.ne.s32.totalorder %s227, %s241
      %p243 = scmp.eq.s32.totalorder %s24, 0
      %p244 = por %p242, %p243
      %s245 = ssub.s32 %s25, %s44
      %s246 = ssub.s32 %s26, %s40
      %s247 = sor.u32 %s245, %s246
      %p248 = scmp.eq.s32.totalorder %s247, 0
      %s250 = sadd.s32 %s249, 1
      %s251 = scalar_select %p248, %s249, %s250
      %p254 = pneg %p248
      %p255 = scmp.eq.s32.totalorder %s18, 7
      %p256 = por %p254, %p255
      %p257 = scmp.ne.s32.totalorder %s249, %s252
      %p258 = scmp.eq.s32.totalorder %s18, 0
      %p259 = por %p257, %p258
      %p260 = scmp.ne.s32.totalorder %s249, %s252
      %p261 = scmp.eq.s32.totalorder %s23, 7
      %p262 = por %p260, %p261
      %p263 = scmp.ne.s32.totalorder %s252, %s253
      %p264 = scmp.eq.s32.totalorder %s23, 0
      %p265 = por %p263, %p264
      %p266 = scmp.ne.s32.totalorder %s252, %s253
      %p267 = scmp.eq.s32.totalorder %s24, 7
      %p268 = por %p266, %p267
      %p270 = scmp.ne.s32.totalorder %s253, %s269
      %p271 = scmp.eq.s32.totalorder %s24, 0
      %p272 = por %p270, %p271
      %p273 = scmp.le.s32.totalorder 1, %s18
      %p274 = scmp.lt.s32.totalorder %s18, 9
      %p275 = pnand %p273, %p274
      %p276 = pneg %p275
      // Predicated region
      $region9: #{tpu_custom_call.1} parent=5 // pred_check
        _
      $region10: #{tpu_custom_call.1} parent=5 // pred_check_branch
        %278 = sbr.rel (%p275) target = $region12
      $region11: #{tpu_custom_call.1} parent=5 // pred_region
        %s279 = ssub.s32 %s18, 1
        // Predicated region
        $region13: #{tpu_custom_call.1} parent=11 // pred_check
          %p280 = pneg %p90
        $region14: #{tpu_custom_call.1} parent=11 // pred_check_branch
          %282 = sbr.rel (%p280) target = $region16
        $region15: #{tpu_custom_call.1} parent=11 // pred_region
          _
        $region16: #{tpu_custom_call.1} parent=11 // pred_fallthru
          _
        // Predicated region
        $region17: #{tpu_custom_call.1} parent=11 // pred_check
          %p283 = pneg %p111
        $region18: #{tpu_custom_call.1} parent=11 // pred_check_branch
          %285 = sbr.rel (%p283) target = $region20
        $region19: #{tpu_custom_call.1} parent=11 // pred_region
          _
        $region20: #{tpu_custom_call.1} parent=11 // pred_fallthru
          _
        // Predicated region
        $region21: #{tpu_custom_call.1} parent=11 // pred_check
          %p286 = pneg %p132
        $region22: #{tpu_custom_call.1} parent=11 // pred_check_branch
          %288 = sbr.rel (%p286) target = $region24
        $region23: #{tpu_custom_call.1} parent=11 // pred_region
          _
        $region24: #{tpu_custom_call.1} parent=11 // pred_fallthru
          _
        // Predicated region
        $region25: #{tpu_custom_call.1} parent=11 // pred_check
          %p289 = pneg %p153
        $region26: #{tpu_custom_call.1} parent=11 // pred_check_branch
          %291 = sbr.rel (%p289) target = $region28
        $region27: #{tpu_custom_call.1} parent=11 // pred_region
          _
        $region28: #{tpu_custom_call.1} parent=11 // pred_fallthru
          _
        // Predicated region
        $region29: #{tpu_custom_call.1} parent=11 // pred_check
          %p292 = pneg %p174
        $region30: #{tpu_custom_call.1} parent=11 // pred_check_branch
          %294 = sbr.rel (%p292) target = $region32
        $region31: #{tpu_custom_call.1} parent=11 // pred_region
          _
        $region32: #{tpu_custom_call.1} parent=11 // pred_fallthru
          _
        // Predicated region
        $region33: #{tpu_custom_call.1} parent=11 // pred_check
          %p295 = pneg %p195
        $region34: #{tpu_custom_call.1} parent=11 // pred_check_branch
          %297 = sbr.rel (%p295) target = $region36
        $region35: #{tpu_custom_call.1} parent=11 // pred_region
          _
        $region36: #{tpu_custom_call.1} parent=11 // pred_fallthru
          _
        // Predicated region
        $region37: #{tpu_custom_call.1} parent=11 // pred_check
          %p298 = pneg %p216
        $region38: #{tpu_custom_call.1} parent=11 // pred_check_branch
          %300 = sbr.rel (%p298) target = $region40
        $region39: #{tpu_custom_call.1} parent=11 // pred_region
          _
        $region40: #{tpu_custom_call.1} parent=11 // pred_fallthru
          _
        // Predicated region
        $region41: #{tpu_custom_call.1} parent=11 // pred_check
          %p301 = pneg %p237
        $region42: #{tpu_custom_call.1} parent=11 // pred_check_branch
          %303 = sbr.rel (%p301) target = $region44
        $region43: #{tpu_custom_call.1} parent=11 // pred_region
          _
        $region44: #{tpu_custom_call.1} parent=11 // pred_fallthru
          _
      $region12: #{tpu_custom_call.1} parent=5 // pred_fallthru
        _
      %p304 = scmp.lt.s32.totalorder %s18, 8
      // Predicated region
      $region45: #{tpu_custom_call.1} parent=5 // pred_check
        %p305 = pneg %p304
      $region46: #{tpu_custom_call.1} parent=5 // pred_check_branch
        %307 = sbr.rel (%p305) target = $region48
      $region47: #{tpu_custom_call.1} parent=5 // pred_region
        // Predicated region
        $region49: #{tpu_custom_call.1} parent=47 // pred_check
          %p308 = pneg %p63
        $region50: #{tpu_custom_call.1} parent=47 // pred_check_branch
          %310 = sbr.rel (%p308) target = $region52
        $region51: #{tpu_custom_call.1} parent=47 // pred_region
          %s311 = smul.u32 %s26, 2
          %s312 = sadd.s32 %s311, %s27
          %s313 = smul.u32 64, %s312
          %p314 = scmp.lt.s32.totalorder %s25, 1
          %s315 = scalar_select %p314, %s25, 1
          %p316 = scmp.lt.s32.totalorder %s313, 255
          %s317 = scalar_select %p316, %s313, 255
          %s318 = smul.addr %s315, 256
          %s319 = sadd.s32 %s317, %s318
          %s320 = smul.addr %s319, 4
          %s321 = scalar_lea.vmem %s0, %s320
          %s322 = smul.u32 %s26, 2
          %s323 = sadd.s32 %s322, %s27
          %s324 = smul.u32 64, %s323
        $region52: #{tpu_custom_call.1} parent=47 // pred_fallthru
          _
      $region48: #{tpu_custom_call.1} parent=5 // pred_fallthru
        _
      %p325 = scmp.le.s32.totalorder 1, %s18
      %p326 = scmp.lt.s32.totalorder %s18, 9
      %p327 = pnand %p325, %p326
      %p328 = pneg %p327
      // Predicated region
      $region53: #{tpu_custom_call.1} parent=5 // pred_check
        _
      $region54: #{tpu_custom_call.1} parent=5 // pred_check_branch
        %330 = sbr.rel (%p327) target = $region56
      $region55: #{tpu_custom_call.1} parent=5 // pred_region
        %s331 = ssub.s32 %s18, 1
        %s332 = smul.u32 %s29, 2
        %s333 = sadd.s32 %s332, %s30
        %s334 = smul.u32 64, %s333
        %p335 = scmp.lt.s32.totalorder %s28, 1
        %s336 = scalar_select %p335, %s28, 1
        %p337 = scmp.lt.s32.totalorder %s334, 255
        %s338 = scalar_select %p337, %s334, 255
        %s339 = smul.addr %s336, 256
        %s340 = sadd.s32 %s338, %s339
        %s341 = smul.addr %s340, 4
        %s342 = scalar_lea.vmem %s0, %s341
        %p343 = pneg %p69
        %p344 = pneg %p66
        %p345 = pneg %p90
        %p346 = pneg %p87
        %p347 = pneg %p111
        %p348 = pneg %p108
        %p349 = pneg %p132
        %p350 = pneg %p129
        %p351 = pneg %p153
        %p352 = pneg %p150
        %p353 = pneg %p174
        %p354 = pneg %p171
        %p355 = pneg %p195
        %p356 = pneg %p192
        %p357 = pneg %p216
        %p358 = pneg %p213
        %p359 = pneg %p237
        %p360 = pneg %p234
        %p361 = pneg %p265
        %p362 = pneg %p262
        %s363 = sand.u32 %s252, 1
        %s364 = scalar_lea.sflag [#allocation3], %s363
        %s365 = sand.u32 %s252, 1
        %s366 = smul.addr %s365, 16
        %s367 = scalar_lea.vmem [#allocation2], %s366
        %s368 = smul.u32 %s29, 2
        %s369 = sadd.s32 %s368, %s30
        %s370 = smul.u32 64, %s369
        %p371 = scmp.lt.s32.totalorder %s28, 1
        %s372 = scalar_select %p371, %s28, 1
        %p373 = scmp.lt.s32.totalorder %s370, 255
        %s374 = scalar_select %p373, %s370, 255
        %s375 = smul.addr %s372, 256
        %s376 = sadd.s32 %s374, %s375
        %s377 = smul.addr %s376, 4
        %s378 = scalar_lea.vmem %s0, %s377
        %s379 = smul.u32 %s29, 2
        %s380 = sadd.s32 %s379, %s30
        %s381 = smul.u32 64, %s380
        %v383 = vld [vmem:[%s378] sm:$0xf]
        %v384 = vld [vmem:[%s378 + $0x4] sm:$0xf]
        %v385 = vld [vmem:[%s378 + $0x8] sm:$0xf]
        %v386 = vld [vmem:[%s378 + $0xc] sm:$0xf]
        %v387 = vld [vmem:[%s378 + $0x10] sm:$0xf]
        %v388 = vld [vmem:[%s378 + $0x14] sm:$0xf]
        %v389 = vld [vmem:[%s378 + $0x18] sm:$0xf]
        %v390 = vld [vmem:[%s378 + $0x1c] sm:$0xf]
        %v391 = vld [vmem:[%s378 + $0x20] sm:$0xf]
        %v392 = vld [vmem:[%s378 + $0x24] sm:$0xf]
        %v393 = vld [vmem:[%s378 + $0x28] sm:$0xf]
        %v394 = vld [vmem:[%s378 + $0x2c] sm:$0xf]
        %v395 = vld [vmem:[%s378 + $0x30] sm:$0xf]
        %v396 = vld [vmem:[%s378 + $0x34] sm:$0xf]
        %v397 = vld [vmem:[%s378 + $0x38] sm:$0xf]
        %v398 = vld [vmem:[%s378 + $0x3c] sm:$0xf]
        %v399 = vld [vmem:[%s378 + $0x40] sm:$0xf]
        %v400 = vld [vmem:[%s378 + $0x44] sm:$0xf]
        %v401 = vld [vmem:[%s378 + $0x48] sm:$0xf]
        %v402 = vld [vmem:[%s378 + $0x4c] sm:$0xf]
        %v403 = vld [vmem:[%s378 + $0x50] sm:$0xf]
        %v404 = vld [vmem:[%s378 + $0x54] sm:$0xf]
        %v405 = vld [vmem:[%s378 + $0x58] sm:$0xf]
        %v406 = vld [vmem:[%s378 + $0x5c] sm:$0xf]
        %v407 = vld [vmem:[%s378 + $0x60] sm:$0xf]
        %v408 = vld [vmem:[%s378 + $0x64] sm:$0xf]
        %v409 = vld [vmem:[%s378 + $0x68] sm:$0xf]
        %v410 = vld [vmem:[%s378 + $0x6c] sm:$0xf]
        %v411 = vld [vmem:[%s378 + $0x70] sm:$0xf]
        %v412 = vld [vmem:[%s378 + $0x74] sm:$0xf]
        %v413 = vld [vmem:[%s378 + $0x78] sm:$0xf]
        %v414 = vld [vmem:[%s378 + $0x7c] sm:$0xf]
        %v415 = vld [vmem:[%s378 + $0x80] sm:$0xf]
        %v416 = vld [vmem:[%s378 + $0x84] sm:$0xf]
        %v417 = vld [vmem:[%s378 + $0x88] sm:$0xf]
        %v418 = vld [vmem:[%s378 + $0x8c] sm:$0xf]
        %v419 = vld [vmem:[%s378 + $0x90] sm:$0xf]
        %v420 = vld [vmem:[%s378 + $0x94] sm:$0xf]
        %v421 = vld [vmem:[%s378 + $0x98] sm:$0xf]
        %v422 = vld [vmem:[%s378 + $0x9c] sm:$0xf]
        %v423 = vld [vmem:[%s378 + $0xa0] sm:$0xf]
        %v424 = vld [vmem:[%s378 + $0xa4] sm:$0xf]
        %v425 = vld [vmem:[%s378 + $0xa8] sm:$0xf]
        %v426 = vld [vmem:[%s378 + $0xac] sm:$0xf]
        %v427 = vld [vmem:[%s378 + $0xb0] sm:$0xf]
        %v428 = vld [vmem:[%s378 + $0xb4] sm:$0xf]
        %v429 = vld [vmem:[%s378 + $0xb8] sm:$0xf]
        %v430 = vld [vmem:[%s378 + $0xbc] sm:$0xf]
        %v431 = vld [vmem:[%s378 + $0xc0] sm:$0xf]
        %v432 = vld [vmem:[%s378 + $0xc4] sm:$0xf]
        %v433 = vld [vmem:[%s378 + $0xc8] sm:$0xf]
        %v434 = vld [vmem:[%s378 + $0xcc] sm:$0xf]
        %v435 = vld [vmem:[%s378 + $0xd0] sm:$0xf]
        %v436 = vld [vmem:[%s378 + $0xd4] sm:$0xf]
        %v437 = vld [vmem:[%s378 + $0xd8] sm:$0xf]
        %v438 = vld [vmem:[%s378 + $0xdc] sm:$0xf]
        %v439 = vld [vmem:[%s378 + $0xe0] sm:$0xf]
        %v440 = vld [vmem:[%s378 + $0xe4] sm:$0xf]
        %v441 = vld [vmem:[%s378 + $0xe8] sm:$0xf]
        %v442 = vld [vmem:[%s378 + $0xec] sm:$0xf]
        %v443 = vld [vmem:[%s378 + $0xf0] sm:$0xf]
        %v444 = vld [vmem:[%s378 + $0xf4] sm:$0xf]
        %v445 = vld [vmem:[%s378 + $0xf8] sm:$0xf]
        %v446 = vld [vmem:[%s378 + $0xfc] sm:$0xf]
        %v447 = vld [vmem:[%s1] sm:$0xf]
        %v448 = vld [vmem:[%s2] sm:$0x1]
        %v450 = vlaneseq
        %v451 = vshrl.u32 %v450, 7
        %v452 = vsub.s32 0, %v451
        %v453 = vrot.slane %v448, %v452
        %v519 = vunpack.c.l.b16 %v383
        %v520 = vunpack.c.l.b16 %v384
        %v521 = vunpack.c.l.b16 %v385
        %v522 = vunpack.c.l.b16 %v386
        %v523 = vunpack.c.l.b16 %v387
        %v524 = vunpack.c.l.b16 %v388
        %v525 = vunpack.c.l.b16 %v389
        %v526 = vunpack.c.l.b16 %v390
        %v527 = vunpack.c.l.b16 %v391
        %v528 = vunpack.c.l.b16 %v392
        %v529 = vunpack.c.l.b16 %v393
        %v530 = vunpack.c.l.b16 %v394
        %v531 = vunpack.c.l.b16 %v395
        %v532 = vunpack.c.l.b16 %v396
        %v533 = vunpack.c.l.b16 %v397
        %v534 = vunpack.c.l.b16 %v398
        %v535 = vunpack.c.l.b16 %v399
        %v536 = vunpack.c.l.b16 %v400
        %v537 = vunpack.c.l.b16 %v401
        %v538 = vunpack.c.l.b16 %v402
        %v539 = vunpack.c.l.b16 %v403
        %v540 = vunpack.c.l.b16 %v404
        %v541 = vunpack.c.l.b16 %v405
        %v542 = vunpack.c.l.b16 %v406
        %v543 = vunpack.c.l.b16 %v407
        %v544 = vunpack.c.l.b16 %v408
        %v545 = vunpack.c.l.b16 %v409
        %v546 = vunpack.c.l.b16 %v410
        %v547 = vunpack.c.l.b16 %v411
        %v548 = vunpack.c.l.b16 %v412
        %v549 = vunpack.c.l.b16 %v413
        %v550 = vunpack.c.l.b16 %v414
        %v551 = vunpack.c.l.b16 %v415
        %v552 = vunpack.c.l.b16 %v416
        %v553 = vunpack.c.l.b16 %v417
        %v554 = vunpack.c.l.b16 %v418
        %v555 = vunpack.c.l.b16 %v419
        %v556 = vunpack.c.l.b16 %v420
        %v557 = vunpack.c.l.b16 %v421
        %v558 = vunpack.c.l.b16 %v422
        %v559 = vunpack.c.l.b16 %v423
        %v560 = vunpack.c.l.b16 %v424
        %v561 = vunpack.c.l.b16 %v425
        %v562 = vunpack.c.l.b16 %v426
        %v563 = vunpack.c.l.b16 %v427
        %v564 = vunpack.c.l.b16 %v428
        %v565 = vunpack.c.l.b16 %v429
        %v566 = vunpack.c.l.b16 %v430
        %v567 = vunpack.c.l.b16 %v431
        %v568 = vunpack.c.l.b16 %v432
        %v569 = vunpack.c.l.b16 %v433
        %v570 = vunpack.c.l.b16 %v434
        %v571 = vunpack.c.l.b16 %v435
        %v572 = vunpack.c.l.b16 %v436
        %v573 = vunpack.c.l.b16 %v437
        %v574 = vunpack.c.l.b16 %v438
        %v575 = vunpack.c.l.b16 %v439
        %v576 = vunpack.c.l.b16 %v440
        %v577 = vunpack.c.l.b16 %v441
        %v578 = vunpack.c.l.b16 %v442
        %v579 = vunpack.c.l.b16 %v443
        %v580 = vunpack.c.l.b16 %v444
        %v581 = vunpack.c.l.b16 %v445
        %v582 = vunpack.c.l.b16 %v446
        %v583 = vpack.c.b16 %v520, %v519
        %v584 = vpack.c.b16 %v522, %v521
        %v585 = vpack.c.b16 %v524, %v523
        %v586 = vpack.c.b16 %v526, %v525
        %v587 = vpack.c.b16 %v528, %v527
        %v588 = vpack.c.b16 %v530, %v529
        %v589 = vpack.c.b16 %v532, %v531
        %v590 = vpack.c.b16 %v534, %v533
        %v591 = vpack.c.b16 %v536, %v535
        %v592 = vpack.c.b16 %v538, %v537
        %v593 = vpack.c.b16 %v540, %v539
        %v594 = vpack.c.b16 %v542, %v541
        %v595 = vpack.c.b16 %v544, %v543
        %v596 = vpack.c.b16 %v546, %v545
        %v597 = vpack.c.b16 %v548, %v547
        %v598 = vpack.c.b16 %v550, %v549
        %v599 = vpack.c.b16 %v552, %v551
        %v600 = vpack.c.b16 %v554, %v553
        %v601 = vpack.c.b16 %v556, %v555
        %v602 = vpack.c.b16 %v558, %v557
        %v603 = vpack.c.b16 %v560, %v559
        %v604 = vpack.c.b16 %v562, %v561
        %v605 = vpack.c.b16 %v564, %v563
        %v606 = vpack.c.b16 %v566, %v565
        %v607 = vpack.c.b16 %v568, %v567
        %v608 = vpack.c.b16 %v570, %v569
        %v609 = vpack.c.b16 %v572, %v571
        %v610 = vpack.c.b16 %v574, %v573
        %v611 = vpack.c.b16 %v576, %v575
        %v612 = vpack.c.b16 %v578, %v577
        %v613 = vpack.c.b16 %v580, %v579
        %v614 = vpack.c.b16 %v582, %v581
        %vm615 = vcmask 64512
        %v617 = vsel %vm615, %v583, 0
        %v620 = vsel %vm615, %v584, 0
        %v623 = vsel %vm615, %v585, 0
        %v626 = vsel %vm615, %v586, 0
        %v629 = vsel %vm615, %v587, 0
        %v632 = vsel %vm615, %v588, 0
        %v635 = vsel %vm615, %v589, 0
        %v638 = vsel %vm615, %v590, 0
        %v641 = vsel %vm615, %v591, 0
        %v644 = vsel %vm615, %v592, 0
        %v647 = vsel %vm615, %v593, 0
        %v650 = vsel %vm615, %v594, 0
        %v653 = vsel %vm615, %v595, 0
        %v656 = vsel %vm615, %v596, 0
        %v659 = vsel %vm615, %v597, 0
        %v662 = vsel %vm615, %v598, 0
        %v665 = vsel %vm615, %v599, 0
        %v668 = vsel %vm615, %v600, 0
        %v671 = vsel %vm615, %v601, 0
        %v674 = vsel %vm615, %v602, 0
        %v677 = vsel %vm615, %v603, 0
        %v680 = vsel %vm615, %v604, 0
        %v683 = vsel %vm615, %v605, 0
        %v686 = vsel %vm615, %v606, 0
        %v689 = vsel %vm615, %v607, 0
        %v692 = vsel %vm615, %v608, 0
        %v695 = vsel %vm615, %v609, 0
        %v698 = vsel %vm615, %v610, 0
        %v701 = vsel %vm615, %v611, 0
        %v704 = vsel %vm615, %v612, 0
        %v707 = vsel %vm615, %v613, 0
        %v710 = vsel %vm615, %v614, 0
        %vm712 = vcmask 1043456
        %v714 = vsel %vm712, %v447, 0
        %716 = vmatprep.subr.bf16.mxu0 0
        %717 = vmatpush1.bf16.msra.mxu0 %v714
        %718 = vmatprep.subr.bf16.mxu0 0
        %719 = vmatpush1.bf16.msra.mxu0 0
        %720 = vmatprep.subr.bf16.mxu0 0
        %721 = vmatpush1.bf16.msra.mxu0 0
        %722 = vmatprep.subr.bf16.mxu0 0
        %723 = vmatpush1.bf16.msra.mxu0 0
        %724 = vmatprep.subr.bf16.mxu0 0
        %725 = vmatpush1.bf16.msra.mxu0 0
        %726 = vmatprep.subr.bf16.mxu0 0
        %727 = vmatpush1.bf16.msra.mxu0 0
        %728 = vmatprep.subr.bf16.mxu0 0
        %729 = vmatpush1.bf16.msra.mxu0 0
        %730 = vmatprep.subr.bf16.mxu0 0
        %731 = vmatpush1.bf16.msra.mxu0 0
        %732 = vmatprep.subr.bf16.mxu0 0
        %733 = vmatpush1.bf16.msra.mxu0 0
        %734 = vmatprep.subr.bf16.mxu0 0
        %735 = vmatpush1.bf16.msra.mxu0 0
        %736 = vmatprep.subr.bf16.mxu0 0
        %737 = vmatpush1.bf16.msra.mxu0 0
        %738 = vmatprep.subr.bf16.mxu0 0
        %739 = vmatpush1.bf16.msra.mxu0 0
        %740 = vmatprep.subr.bf16.mxu0 0
        %741 = vmatpush1.bf16.msra.mxu0 0
        %742 = vmatprep.subr.bf16.mxu0 0
        %743 = vmatpush1.bf16.msra.mxu0 0
        %744 = vmatprep.subr.bf16.mxu0 0
        %745 = vmatpush1.bf16.msra.mxu0 0
        %746 = vmatprep.subr.bf16.mxu0 0
        %747 = vmatpush1.bf16.msra.mxu0 0
        %748 = vmatprep.mubr.bf16.mxu0 0
        %749 = vmatmul.mubr.bf16.gmra.mrb[0].mxu0 %v617
        %v750 = vpop.f32.mrb[0].mxu0
        %v751 = vadd.f32 %v453, %v750
        %v752 = vpop.f32.mrb[0].mxu0
        %v753 = vpop.f32.mrb[0].mxu0
        %v754 = vadd.f32 %v453, %v753
        %v755 = vpop.f32.mrb[0].mxu0
        %756 = vmatprep.mubr.bf16.mxu0 0
        %757 = vmatmul.mubr.bf16.gmra.mrb[0].mxu0 %v620
        %v758 = vpop.f32.mrb[0].mxu0
        %v759 = vadd.f32 %v453, %v758
        %v760 = vpop.f32.mrb[0].mxu0
        %v761 = vpop.f32.mrb[0].mxu0
        %v762 = vadd.f32 %v453, %v761
        %v763 = vpop.f32.mrb[0].mxu0
        %764 = vmatprep.mubr.bf16.mxu0 0
        %765 = vmatmul.mubr.bf16.gmra.mrb[0].mxu0 %v623
        %v766 = vpop.f32.mrb[0].mxu0
        %v767 = vadd.f32 %v453, %v766
        %v768 = vpop.f32.mrb[0].mxu0
        %v769 = vpop.f32.mrb[0].mxu0
        %v770 = vadd.f32 %v453, %v769
        %v771 = vpop.f32.mrb[0].mxu0
        %772 = vmatprep.mubr.bf16.mxu0 0
        %773 = vmatmul.mubr.bf16.gmra.mrb[0].mxu0 %v626
        %v774 = vpop.f32.mrb[0].mxu0
        %v775 = vadd.f32 %v453, %v774
        %v776 = vpop.f32.mrb[0].mxu0
        %v777 = vpop.f32.mrb[0].mxu0
        %v778 = vadd.f32 %v453, %v777
        %v779 = vpop.f32.mrb[0].mxu0
        %780 = vmatprep.mubr.bf16.mxu0 0
        %781 = vmatmul.mubr.bf16.gmra.mrb[0].mxu0 %v629
        %v782 = vpop.f32.mrb[0].mxu0
        %v783 = vadd.f32 %v453, %v782
        %v784 = vpop.f32.mrb[0].mxu0
        %v785 = vpop.f32.mrb[0].mxu0
        %v786 = vadd.f32 %v453, %v785
        %v787 = vpop.f32.mrb[0].mxu0
        %788 = vmatprep.mubr.bf16.mxu0 0
        %789 = vmatmul.mubr.bf16.gmra.mrb[0].mxu0 %v632
        %v790 = vpop.f32.mrb[0].mxu0
        %v791 = vadd.f32 %v453, %v790
        %v792 = vpop.f32.mrb[0].mxu0
        %v793 = vpop.f32.mrb[0].mxu0
        %v794 = vadd.f32 %v453, %v793
        %v795 = vpop.f32.mrb[0].mxu0
        %796 = vmatprep.mubr.bf16.mxu0 0
        %797 = vmatmul.mubr.bf16.gmra.mrb[0].mxu0 %v635
        %v798 = vpop.f32.mrb[0].mxu0
        %v799 = vadd.f32 %v453, %v798
        %v800 = vpop.f32.mrb[0].mxu0
        %v801 = vpop.f32.mrb[0].mxu0
        %v802 = vadd.f32 %v453, %v801
        %v803 = vpop.f32.mrb[0].mxu0
        %804 = vmatprep.mubr.bf16.mxu0 0
        %805 = vmatmul.mubr.bf16.gmra.mrb[0].mxu0 %v638
        %v806 = vpop.f32.mrb[0].mxu0
        %v807 = vadd.f32 %v453, %v806
        %v808 = vpop.f32.mrb[0].mxu0
        %v809 = vpop.f32.mrb[0].mxu0
        %v810 = vadd.f32 %v453, %v809
        %v811 = vpop.f32.mrb[0].mxu0
        %812 = vmatprep.mubr.bf16.mxu0 0
        %813 = vmatmul.mubr.bf16.gmra.mrb[0].mxu0 %v641
        %v814 = vpop.f32.mrb[0].mxu0
        %v815 = vadd.f32 %v453, %v814
        %v816 = vpop.f32.mrb[0].mxu0
        %v817 = vpop.f32.mrb[0].mxu0
        %v818 = vadd.f32 %v453, %v817
        %v819 = vpop.f32.mrb[0].mxu0
        %820 = vmatprep.mubr.bf16.mxu0 0
        %821 = vmatmul.mubr.bf16.gmra.mrb[0].mxu0 %v644
        %v822 = vpop.f32.mrb[0].mxu0
        %v823 = vadd.f32 %v453, %v822
        %v824 = vpop.f32.mrb[0].mxu0
        %v825 = vpop.f32.mrb[0].mxu0
        %v826 = vadd.f32 %v453, %v825
        %v827 = vpop.f32.mrb[0].mxu0
        %828 = vmatprep.mubr.bf16.mxu0 0
        %829 = vmatmul.mubr.bf16.gmra.mrb[0].mxu0 %v647
        %v830 = vpop.f32.mrb[0].mxu0
        %v831 = vadd.f32 %v453, %v830
        %v832 = vpop.f32.mrb[0].mxu0
        %v833 = vpop.f32.mrb[0].mxu0
        %v834 = vadd.f32 %v453, %v833
        %v835 = vpop.f32.mrb[0].mxu0
        %836 = vmatprep.mubr.bf16.mxu0 0
        %837 = vmatmul.mubr.bf16.gmra.mrb[0].mxu0 %v650
        %v838 = vpop.f32.mrb[0].mxu0
        %v839 = vadd.f32 %v453, %v838
        %v840 = vpop.f32.mrb[0].mxu0
        %v841 = vpop.f32.mrb[0].mxu0
        %v842 = vadd.f32 %v453, %v841
        %v843 = vpop.f32.mrb[0].mxu0
        %844 = vmatprep.mubr.bf16.mxu0 0
        %845 = vmatmul.mubr.bf16.gmra.mrb[0].mxu0 %v653
        %v846 = vpop.f32.mrb[0].mxu0
        %v847 = vadd.f32 %v453, %v846
        %v848 = vpop.f32.mrb[0].mxu0
        %v849 = vpop.f32.mrb[0].mxu0
        %v850 = vadd.f32 %v453, %v849
        %v851 = vpop.f32.mrb[0].mxu0
        %852 = vmatprep.mubr.bf16.mxu0 0
        %853 = vmatmul.mubr.bf16.gmra.mrb[0].mxu0 %v656
        %v854 = vpop.f32.mrb[0].mxu0
        %v855 = vadd.f32 %v453, %v854
        %v856 = vpop.f32.mrb[0].mxu0
        %v857 = vpop.f32.mrb[0].mxu0
        %v858 = vadd.f32 %v453, %v857
        %v859 = vpop.f32.mrb[0].mxu0
        %860 = vmatprep.mubr.bf16.mxu0 0
        %861 = vmatmul.mubr.bf16.gmra.mrb[0].mxu0 %v659
        %v862 = vpop.f32.mrb[0].mxu0
        %v863 = vadd.f32 %v453, %v862
        %v864 = vpop.f32.mrb[0].mxu0
        %v865 = vpop.f32.mrb[0].mxu0
        %v866 = vadd.f32 %v453, %v865
        %v867 = vpop.f32.mrb[0].mxu0
        %868 = vmatprep.mubr.bf16.mxu0 0
        %869 = vmatmul.mubr.bf16.gmra.mrb[0].mxu0 %v662
        %v870 = vpop.f32.mrb[0].mxu0
        %v871 = vadd.f32 %v453, %v870
        %v872 = vpop.f32.mrb[0].mxu0
        %v873 = vpop.f32.mrb[0].mxu0
        %v874 = vadd.f32 %v453, %v873
        %v875 = vpop.f32.mrb[0].mxu0
        %876 = vmatprep.mubr.bf16.mxu0 0
        %877 = vmatmul.mubr.bf16.gmra.mrb[0].mxu0 %v665
        %v878 = vpop.f32.mrb[0].mxu0
        %v879 = vadd.f32 %v453, %v878
        %v880 = vpop.f32.mrb[0].mxu0
        %v881 = vpop.f32.mrb[0].mxu0
        %v882 = vadd.f32 %v453, %v881
        %v883 = vpop.f32.mrb[0].mxu0
        %884 = vmatprep.mubr.bf16.mxu0 0
        %885 = vmatmul.mubr.bf16.gmra.mrb[0].mxu0 %v668
        %v886 = vpop.f32.mrb[0].mxu0
        %v887 = vadd.f32 %v453, %v886
        %v888 = vpop.f32.mrb[0].mxu0
        %v889 = vpop.f32.mrb[0].mxu0
        %v890 = vadd.f32 %v453, %v889
        %v891 = vpop.f32.mrb[0].mxu0
        %892 = vmatprep.mubr.bf16.mxu0 0
        %893 = vmatmul.mubr.bf16.gmra.mrb[0].mxu0 %v671
        %v894 = vpop.f32.mrb[0].mxu0
        %v895 = vadd.f32 %v453, %v894
        %v896 = vpop.f32.mrb[0].mxu0
        %v897 = vpop.f32.mrb[0].mxu0
        %v898 = vadd.f32 %v453, %v897
        %v899 = vpop.f32.mrb[0].mxu0
        %900 = vmatprep.mubr.bf16.mxu0 0
        %901 = vmatmul.mubr.bf16.gmra.mrb[0].mxu0 %v674
        %v902 = vpop.f32.mrb[0].mxu0
        %v903 = vadd.f32 %v453, %v902
        %v904 = vpop.f32.mrb[0].mxu0
        %v905 = vpop.f32.mrb[0].mxu0
        %v906 = vadd.f32 %v453, %v905
        %v907 = vpop.f32.mrb[0].mxu0
        %908 = vmatprep.mubr.bf16.mxu0 0
        %909 = vmatmul.mubr.bf16.gmra.mrb[0].mxu0 %v677
        %v910 = vpop.f32.mrb[0].mxu0
        %v911 = vadd.f32 %v453, %v910
        %v912 = vpop.f32.mrb[0].mxu0
        %v913 = vpop.f32.mrb[0].mxu0
        %v914 = vadd.f32 %v453, %v913
        %v915 = vpop.f32.mrb[0].mxu0
        %916 = vmatprep.mubr.bf16.mxu0 0
        %917 = vmatmul.mubr.bf16.gmra.mrb[0].mxu0 %v680
        %v918 = vpop.f32.mrb[0].mxu0
        %v919 = vadd.f32 %v453, %v918
        %v920 = vpop.f32.mrb[0].mxu0
        %v921 = vpop.f32.mrb[0].mxu0
        %v922 = vadd.f32 %v453, %v921
        %v923 = vpop.f32.mrb[0].mxu0
        %924 = vmatprep.mubr.bf16.mxu0 0
        %925 = vmatmul.mubr.bf16.gmra.mrb[0].mxu0 %v683
        %v926 = vpop.f32.mrb[0].mxu0
        %v927 = vadd.f32 %v453, %v926
        %v928 = vpop.f32.mrb[0].mxu0
        %v929 = vpop.f32.mrb[0].mxu0
        %v930 = vadd.f32 %v453, %v929
        %v931 = vpop.f32.mrb[0].mxu0
        %932 = vmatprep.mubr.bf16.mxu0 0
        %933 = vmatmul.mubr.bf16.gmra.mrb[0].mxu0 %v686
        %v934 = vpop.f32.mrb[0].mxu0
        %v935 = vadd.f32 %v453, %v934
        %v936 = vpop.f32.mrb[0].mxu0
        %v937 = vpop.f32.mrb[0].mxu0
        %v938 = vadd.f32 %v453, %v937
        %v939 = vpop.f32.mrb[0].mxu0
        %940 = vmatprep.mubr.bf16.mxu0 0
        %941 = vmatmul.mubr.bf16.gmra.mrb[0].mxu0 %v689
        %v942 = vpop.f32.mrb[0].mxu0
        %v943 = vadd.f32 %v453, %v942
        %v944 = vpop.f32.mrb[0].mxu0
        %v945 = vpop.f32.mrb[0].mxu0
        %v946 = vadd.f32 %v453, %v945
        %v947 = vpop.f32.mrb[0].mxu0
        %948 = vmatprep.mubr.bf16.mxu0 0
        %949 = vmatmul.mubr.bf16.gmra.mrb[0].mxu0 %v692
        %v950 = vpop.f32.mrb[0].mxu0
        %v951 = vadd.f32 %v453, %v950
        %v952 = vpop.f32.mrb[0].mxu0
        %v953 = vpop.f32.mrb[0].mxu0
        %v954 = vadd.f32 %v453, %v953
        %v955 = vpop.f32.mrb[0].mxu0
        %956 = vmatprep.mubr.bf16.mxu0 0
        %957 = vmatmul.mubr.bf16.gmra.mrb[0].mxu0 %v695
        %v958 = vpop.f32.mrb[0].mxu0
        %v959 = vadd.f32 %v453, %v958
        %v960 = vpop.f32.mrb[0].mxu0
        %v961 = vpop.f32.mrb[0].mxu0
        %v962 = vadd.f32 %v453, %v961
        %v963 = vpop.f32.mrb[0].mxu0
        %964 = vmatprep.mubr.bf16.mxu0 0
        %965 = vmatmul.mubr.bf16.gmra.mrb[0].mxu0 %v698
        %v966 = vpop.f32.mrb[0].mxu0
        %v967 = vadd.f32 %v453, %v966
        %v968 = vpop.f32.mrb[0].mxu0
        %v969 = vpop.f32.mrb[0].mxu0
        %v970 = vadd.f32 %v453, %v969
        %v971 = vpop.f32.mrb[0].mxu0
        %972 = vmatprep.mubr.bf16.mxu0 0
        %973 = vmatmul.mubr.bf16.gmra.mrb[0].mxu0 %v701
        %v974 = vpop.f32.mrb[0].mxu0
        %v975 = vadd.f32 %v453, %v974
        %v976 = vpop.f32.mrb[0].mxu0
        %v977 = vpop.f32.mrb[0].mxu0
        %v978 = vadd.f32 %v453, %v977
        %v979 = vpop.f32.mrb[0].mxu0
        %980 = vmatprep.mubr.bf16.mxu0 0
        %981 = vmatmul.mubr.bf16.gmra.mrb[0].mxu0 %v704
        %v982 = vpop.f32.mrb[0].mxu0
        %v983 = vadd.f32 %v453, %v982
        %v984 = vpop.f32.mrb[0].mxu0
        %v985 = vpop.f32.mrb[0].mxu0
        %v986 = vadd.f32 %v453, %v985
        %v987 = vpop.f32.mrb[0].mxu0
        %988 = vmatprep.mubr.bf16.mxu0 0
        %989 = vmatmul.mubr.bf16.gmra.mrb[0].mxu0 %v707
        %v990 = vpop.f32.mrb[0].mxu0
        %v991 = vadd.f32 %v453, %v990
        %v992 = vpop.f32.mrb[0].mxu0
        %v993 = vpop.f32.mrb[0].mxu0
        %v994 = vadd.f32 %v453, %v993
        %v995 = vpop.f32.mrb[0].mxu0
        %996 = vmatprep.mubr.bf16.mxu0 0
        %997 = vmatmul.mubr.bf16.gmra.mrb[0].mxu0 %v710
        %v998 = vpop.f32.mrb[0].mxu0
        %v999 = vadd.f32 %v453, %v998
        %v1000 = vpop.f32.mrb[0].mxu0
        %v1001 = vpop.f32.mrb[0].mxu0
        %v1002 = vadd.f32 %v453, %v1001
        %v1003 = vpop.f32.mrb[0].mxu0
        %1004 = vdwg.mxu0
        %v1005 = vmax.f32 %v751, 0.0
        %v1006 = vmax.f32 %v754, 0.0
        %v1007 = vmax.f32 %v759, 0.0
        %v1008 = vmax.f32 %v762, 0.0
        %v1009 = vmax.f32 %v767, 0.0
        %v1010 = vmax.f32 %v770, 0.0
        %v1011 = vmax.f32 %v775, 0.0
        %v1012 = vmax.f32 %v778, 0.0
        %v1013 = vmax.f32 %v783, 0.0
        %v1014 = vmax.f32 %v786, 0.0
        %v1015 = vmax.f32 %v791, 0.0
        %v1016 = vmax.f32 %v794, 0.0
        %v1017 = vmax.f32 %v799, 0.0
        %v1018 = vmax.f32 %v802, 0.0
        %v1019 = vmax.f32 %v807, 0.0
        %v1020 = vmax.f32 %v810, 0.0
        %v1021 = vmax.f32 %v815, 0.0
        %v1022 = vmax.f32 %v818, 0.0
        %v1023 = vmax.f32 %v823, 0.0
        %v1024 = vmax.f32 %v826, 0.0
        %v1025 = vmax.f32 %v831, 0.0
        %v1026 = vmax.f32 %v834, 0.0
        %v1027 = vmax.f32 %v839, 0.0
        %v1028 = vmax.f32 %v842, 0.0
        %v1029 = vmax.f32 %v847, 0.0
        %v1030 = vmax.f32 %v850, 0.0
        %v1031 = vmax.f32 %v855, 0.0
        %v1032 = vmax.f32 %v858, 0.0
        %v1033 = vmax.f32 %v863, 0.0
        %v1034 = vmax.f32 %v866, 0.0
        %v1035 = vmax.f32 %v871, 0.0
        %v1036 = vmax.f32 %v874, 0.0
        %v1037 = vmax.f32 %v879, 0.0
        %v1038 = vmax.f32 %v882, 0.0
        %v1039 = vmax.f32 %v887, 0.0
        %v1040 = vmax.f32 %v890, 0.0
        %v1041 = vmax.f32 %v895, 0.0
        %v1042 = vmax.f32 %v898, 0.0
        %v1043 = vmax.f32 %v903, 0.0
        %v1044 = vmax.f32 %v906, 0.0
        %v1045 = vmax.f32 %v911, 0.0
        %v1046 = vmax.f32 %v914, 0.0
        %v1047 = vmax.f32 %v919, 0.0
        %v1048 = vmax.f32 %v922, 0.0
        %v1049 = vmax.f32 %v927, 0.0
        %v1050 = vmax.f32 %v930, 0.0
        %v1051 = vmax.f32 %v935, 0.0
        %v1052 = vmax.f32 %v938, 0.0
        %v1053 = vmax.f32 %v943, 0.0
        %v1054 = vmax.f32 %v946, 0.0
        %v1055 = vmax.f32 %v951, 0.0
        %v1056 = vmax.f32 %v954, 0.0
        %v1057 = vmax.f32 %v959, 0.0
        %v1058 = vmax.f32 %v962, 0.0
        %v1059 = vmax.f32 %v967, 0.0
        %v1060 = vmax.f32 %v970, 0.0
        %v1061 = vmax.f32 %v975, 0.0
        %v1062 = vmax.f32 %v978, 0.0
        %v1063 = vmax.f32 %v983, 0.0
        %v1064 = vmax.f32 %v986, 0.0
        %v1065 = vmax.f32 %v991, 0.0
        %v1066 = vmax.f32 %v994, 0.0
        %v1067 = vmax.f32 %v999, 0.0
        %v1068 = vmax.f32 %v1002, 0.0
        %v1069 = vpack.c.bf16 %v1006, %v1005
        %v1070 = vpack.c.bf16 %v1008, %v1007
        %v1071 = vpack.c.bf16 %v1010, %v1009
        %v1072 = vpack.c.bf16 %v1012, %v1011
        %v1073 = vpack.c.bf16 %v1014, %v1013
        %v1074 = vpack.c.bf16 %v1016, %v1015
        %v1075 = vpack.c.bf16 %v1018, %v1017
        %v1076 = vpack.c.bf16 %v1020, %v1019
        %v1077 = vpack.c.bf16 %v1022, %v1021
        %v1078 = vpack.c.bf16 %v1024, %v1023
        %v1079 = vpack.c.bf16 %v1026, %v1025
        %v1080 = vpack.c.bf16 %v1028, %v1027
        %v1081 = vpack.c.bf16 %v1030, %v1029
        %v1082 = vpack.c.bf16 %v1032, %v1031
        %v1083 = vpack.c.bf16 %v1034, %v1033
        %v1084 = vpack.c.bf16 %v1036, %v1035
        %v1085 = vpack.c.bf16 %v1038, %v1037
        %v1086 = vpack.c.bf16 %v1040, %v1039
        %v1087 = vpack.c.bf16 %v1042, %v1041
        %v1088 = vpack.c.bf16 %v1044, %v1043
        %v1089 = vpack.c.bf16 %v1046, %v1045
        %v1090 = vpack.c.bf16 %v1048, %v1047
        %v1091 = vpack.c.bf16 %v1050, %v1049
        %v1092 = vpack.c.bf16 %v1052, %v1051
        %v1093 = vpack.c.bf16 %v1054, %v1053
        %v1094 = vpack.c.bf16 %v1056, %v1055
        %v1095 = vpack.c.bf16 %v1058, %v1057
        %v1096 = vpack.c.bf16 %v1060, %v1059
        %v1097 = vpack.c.bf16 %v1062, %v1061
        %v1098 = vpack.c.bf16 %v1064, %v1063
        %v1099 = vpack.c.bf16 %v1066, %v1065
        %v1100 = vpack.c.bf16 %v1068, %v1067
        %v1101 = vld [vmem:[%s3] sm:$0xf]
        %v1102 = vld [vmem:[%s3 + $0x4] sm:$0xf]
        %v1103 = vld [vmem:[%s3 + $0x8] sm:$0xf]
        %v1104 = vld [vmem:[%s3 + $0xc] sm:$0xf]
        %v1105 = vld [vmem:[%s3 + $0x10] sm:$0xf]
        %v1106 = vld [vmem:[%s3 + $0x14] sm:$0xf]
        %v1107 = vld [vmem:[%s3 + $0x18] sm:$0xf]
        %v1108 = vld [vmem:[%s3 + $0x1c] sm:$0xf]
        %v1109 = vld [vmem:[%s4] sm:$0x1]
        %v1111 = vlaneseq
        %v1112 = vshrl.u32 %v1111, 7
        %v1113 = vsub.s32 0, %v1112
        %v1114 = vrot.slane %v1109, %v1113
        %v1124 = vunpack.c.l.b16 %v1101
        %v1125 = vunpack.c.l.b16 %v1102
        %v1126 = vunpack.c.l.b16 %v1103
        %v1127 = vunpack.c.l.b16 %v1104
        %v1128 = vunpack.c.l.b16 %v1105
        %v1129 = vunpack.c.l.b16 %v1106
        %v1130 = vunpack.c.l.b16 %v1107
        %v1131 = vunpack.c.l.b16 %v1108
        %v1132 = vpack.c.b16 %v1125, %v1124
        %v1133 = vpack.c.b16 %v1127, %v1126
        %v1134 = vpack.c.b16 %v1129, %v1128
        %v1135 = vpack.c.b16 %v1131, %v1130
        %vm1140 = vcmask 523264
        %v1142 = vsel %vm1140, %v1069, 0
        %v1145 = vsel %vm1140, %v1070, 0
        %v1148 = vsel %vm1140, %v1071, 0
        %v1151 = vsel %vm1140, %v1072, 0
        %v1154 = vsel %vm1140, %v1073, 0
        %v1157 = vsel %vm1140, %v1074, 0
        %v1160 = vsel %vm1140, %v1075, 0
        %v1163 = vsel %vm1140, %v1076, 0
        %v1166 = vsel %vm1140, %v1077, 0
        %v1169 = vsel %vm1140, %v1078, 0
        %v1172 = vsel %vm1140, %v1079, 0
        %v1175 = vsel %vm1140, %v1080, 0
        %v1178 = vsel %vm1140, %v1081, 0
        %v1181 = vsel %vm1140, %v1082, 0
        %v1184 = vsel %vm1140, %v1083, 0
        %v1187 = vsel %vm1140, %v1084, 0
        %v1190 = vsel %vm1140, %v1085, 0
        %v1193 = vsel %vm1140, %v1086, 0
        %v1196 = vsel %vm1140, %v1087, 0
        %v1199 = vsel %vm1140, %v1088, 0
        %v1202 = vsel %vm1140, %v1089, 0
        %v1205 = vsel %vm1140, %v1090, 0
        %v1208 = vsel %vm1140, %v1091, 0
        %v1211 = vsel %vm1140, %v1092, 0
        %v1214 = vsel %vm1140, %v1093, 0
        %v1217 = vsel %vm1140, %v1094, 0
        %v1220 = vsel %vm1140, %v1095, 0
        %v1223 = vsel %vm1140, %v1096, 0
        %v1226 = vsel %vm1140, %v1097, 0
        %v1229 = vsel %vm1140, %v1098, 0
        %v1232 = vsel %vm1140, %v1099, 0
        %v1235 = vsel %vm1140, %v1100, 0
        %1237 = vmatprep.subr.bf16.mxu0 0
        %1238 = vmatpush1.bf16.msra.mxu0 %v1132
        %1239 = vmatprep.subr.bf16.mxu0 0
        %1240 = vmatpush1.bf16.msra.mxu0 %v1133
        %1241 = vmatprep.subr.bf16.mxu0 0
        %1242 = vmatpush1.bf16.msra.mxu0 %v1134
        %1243 = vmatprep.subr.bf16.mxu0 0
        %1244 = vmatpush1.bf16.msra.mxu0 %v1135
        %1245 = vmatprep.subr.bf16.mxu0 0
        %1246 = vmatpush1.bf16.msra.mxu0 0
        %1247 = vmatprep.subr.bf16.mxu0 0
        %1248 = vmatpush1.bf16.msra.mxu0 0
        %1249 = vmatprep.subr.bf16.mxu0 0
        %1250 = vmatpush1.bf16.msra.mxu0 0
        %1251 = vmatprep.subr.bf16.mxu0 0
        %1252 = vmatpush1.bf16.msra.mxu0 0
        %1253 = vmatprep.subr.bf16.mxu0 0
        %1254 = vmatpush1.bf16.msra.mxu0 0
        %1255 = vmatprep.subr.bf16.mxu0 0
        %1256 = vmatpush1.bf16.msra.mxu0 0
        %1257 = vmatprep.subr.bf16.mxu0 0
        %1258 = vmatpush1.bf16.msra.mxu0 0
        %1259 = vmatprep.subr.bf16.mxu0 0
        %1260 = vmatpush1.bf16.msra.mxu0 0
        %1261 = vmatprep.subr.bf16.mxu0 0
        %1262 = vmatpush1.bf16.msra.mxu0 0
        %1263 = vmatprep.subr.bf16.mxu0 0
        %1264 = vmatpush1.bf16.msra.mxu0 0
        %1265 = vmatprep.subr.bf16.mxu0 0
        %1266 = vmatpush1.bf16.msra.mxu0 0
        %1267 = vmatprep.subr.bf16.mxu0 0
        %1268 = vmatpush1.bf16.msra.mxu0 0
        %1269 = vmatprep.mubr.bf16.mxu0 0
        %1270 = vmatmul.mubr.bf16.gmra.mrb[0].mxu0 %v1142
        %v1271 = vpop.f32.mrb[0].mxu0
        %v1272 = vadd.f32 %v1114, %v1271
        %v1273 = vpop.f32.mrb[0].mxu0
        %v1274 = vpop.f32.mrb[0].mxu0
        %v1275 = vadd.f32 %v1114, %v1274
        %v1276 = vpop.f32.mrb[0].mxu0
        %1277 = vmatprep.mubr.bf16.mxu0 0
        %1278 = vmatmul.mubr.bf16.gmra.mrb[0].mxu0 %v1145
        %v1279 = vpop.f32.mrb[0].mxu0
        %v1280 = vadd.f32 %v1114, %v1279
        %v1281 = vpop.f32.mrb[0].mxu0
        %v1282 = vpop.f32.mrb[0].mxu0
        %v1283 = vadd.f32 %v1114, %v1282
        %v1284 = vpop.f32.mrb[0].mxu0
        %1285 = vmatprep.mubr.bf16.mxu0 0
        %1286 = vmatmul.mubr.bf16.gmra.mrb[0].mxu0 %v1148
        %v1287 = vpop.f32.mrb[0].mxu0
        %v1288 = vadd.f32 %v1114, %v1287
        %v1289 = vpop.f32.mrb[0].mxu0
        %v1290 = vpop.f32.mrb[0].mxu0
        %v1291 = vadd.f32 %v1114, %v1290
        %v1292 = vpop.f32.mrb[0].mxu0
        %1293 = vmatprep.mubr.bf16.mxu0 0
        %1294 = vmatmul.mubr.bf16.gmra.mrb[0].mxu0 %v1151
        %v1295 = vpop.f32.mrb[0].mxu0
        %v1296 = vadd.f32 %v1114, %v1295
        %v1297 = vpop.f32.mrb[0].mxu0
        %v1298 = vpop.f32.mrb[0].mxu0
        %v1299 = vadd.f32 %v1114, %v1298
        %v1300 = vpop.f32.mrb[0].mxu0
        %1301 = vmatprep.mubr.bf16.mxu0 0
        %1302 = vmatmul.mubr.bf16.gmra.mrb[0].mxu0 %v1154
        %v1303 = vpop.f32.mrb[0].mxu0
        %v1304 = vadd.f32 %v1114, %v1303
        %v1305 = vpop.f32.mrb[0].mxu0
        %v1306 = vpop.f32.mrb[0].mxu0
        %v1307 = vadd.f32 %v1114, %v1306
        %v1308 = vpop.f32.mrb[0].mxu0
        %1309 = vmatprep.mubr.bf16.mxu0 0
        %1310 = vmatmul.mubr.bf16.gmra.mrb[0].mxu0 %v1157
        %v1311 = vpop.f32.mrb[0].mxu0
        %v1312 = vadd.f32 %v1114, %v1311
        %v1313 = vpop.f32.mrb[0].mxu0
        %v1314 = vpop.f32.mrb[0].mxu0
        %v1315 = vadd.f32 %v1114, %v1314
        %v1316 = vpop.f32.mrb[0].mxu0
        %1317 = vmatprep.mubr.bf16.mxu0 0
        %1318 = vmatmul.mubr.bf16.gmra.mrb[0].mxu0 %v1160
        %v1319 = vpop.f32.mrb[0].mxu0
        %v1320 = vadd.f32 %v1114, %v1319
        %v1321 = vpop.f32.mrb[0].mxu0
        %v1322 = vpop.f32.mrb[0].mxu0
        %v1323 = vadd.f32 %v1114, %v1322
        %v1324 = vpop.f32.mrb[0].mxu0
        %1325 = vmatprep.mubr.bf16.mxu0 0
        %1326 = vmatmul.mubr.bf16.gmra.mrb[0].mxu0 %v1163
        %v1327 = vpop.f32.mrb[0].mxu0
        %v1328 = vadd.f32 %v1114, %v1327
        %v1329 = vpop.f32.mrb[0].mxu0
        %v1330 = vpop.f32.mrb[0].mxu0
        %v1331 = vadd.f32 %v1114, %v1330
        %v1332 = vpop.f32.mrb[0].mxu0
        %1333 = vmatprep.mubr.bf16.mxu0 0
        %1334 = vmatmul.mubr.bf16.gmra.mrb[0].mxu0 %v1166
        %v1335 = vpop.f32.mrb[0].mxu0
        %v1336 = vadd.f32 %v1114, %v1335
        %v1337 = vpop.f32.mrb[0].mxu0
        %v1338 = vpop.f32.mrb[0].mxu0
        %v1339 = vadd.f32 %v1114, %v1338
        %v1340 = vpop.f32.mrb[0].mxu0
        %1341 = vmatprep.mubr.bf16.mxu0 0
        %1342 = vmatmul.mubr.bf16.gmra.mrb[0].mxu0 %v1169
        %v1343 = vpop.f32.mrb[0].mxu0
        %v1344 = vadd.f32 %v1114, %v1343
        %v1345 = vpop.f32.mrb[0].mxu0
        %v1346 = vpop.f32.mrb[0].mxu0
        %v1347 = vadd.f32 %v1114, %v1346
        %v1348 = vpop.f32.mrb[0].mxu0
        %1349 = vmatprep.mubr.bf16.mxu0 0
        %1350 = vmatmul.mubr.bf16.gmra.mrb[0].mxu0 %v1172
        %v1351 = vpop.f32.mrb[0].mxu0
        %v1352 = vadd.f32 %v1114, %v1351
        %v1353 = vpop.f32.mrb[0].mxu0
        %v1354 = vpop.f32.mrb[0].mxu0
        %v1355 = vadd.f32 %v1114, %v1354
        %v1356 = vpop.f32.mrb[0].mxu0
        %1357 = vmatprep.mubr.bf16.mxu0 0
        %1358 = vmatmul.mubr.bf16.gmra.mrb[0].mxu0 %v1175
        %v1359 = vpop.f32.mrb[0].mxu0
        %v1360 = vadd.f32 %v1114, %v1359
        %v1361 = vpop.f32.mrb[0].mxu0
        %v1362 = vpop.f32.mrb[0].mxu0
        %v1363 = vadd.f32 %v1114, %v1362
        %v1364 = vpop.f32.mrb[0].mxu0
        %1365 = vmatprep.mubr.bf16.mxu0 0
        %1366 = vmatmul.mubr.bf16.gmra.mrb[0].mxu0 %v1178
        %v1367 = vpop.f32.mrb[0].mxu0
        %v1368 = vadd.f32 %v1114, %v1367
        %v1369 = vpop.f32.mrb[0].mxu0
        %v1370 = vpop.f32.mrb[0].mxu0
        %v1371 = vadd.f32 %v1114, %v1370
        %v1372 = vpop.f32.mrb[0].mxu0
        %1373 = vmatprep.mubr.bf16.mxu0 0
        %1374 = vmatmul.mubr.bf16.gmra.mrb[0].mxu0 %v1181
        %v1375 = vpop.f32.mrb[0].mxu0
        %v1376 = vadd.f32 %v1114, %v1375
        %v1377 = vpop.f32.mrb[0].mxu0
        %v1378 = vpop.f32.mrb[0].mxu0
        %v1379 = vadd.f32 %v1114, %v1378
        %v1380 = vpop.f32.mrb[0].mxu0
        %1381 = vmatprep.mubr.bf16.mxu0 0
        %1382 = vmatmul.mubr.bf16.gmra.mrb[0].mxu0 %v1184
        %v1383 = vpop.f32.mrb[0].mxu0
        %v1384 = vadd.f32 %v1114, %v1383
        %v1385 = vpop.f32.mrb[0].mxu0
        %v1386 = vpop.f32.mrb[0].mxu0
        %v1387 = vadd.f32 %v1114, %v1386
        %v1388 = vpop.f32.mrb[0].mxu0
        %1389 = vmatprep.mubr.bf16.mxu0 0
        %1390 = vmatmul.mubr.bf16.gmra.mrb[0].mxu0 %v1187
        %v1391 = vpop.f32.mrb[0].mxu0
        %v1392 = vadd.f32 %v1114, %v1391
        %v1393 = vpop.f32.mrb[0].mxu0
        %v1394 = vpop.f32.mrb[0].mxu0
        %v1395 = vadd.f32 %v1114, %v1394
        %v1396 = vpop.f32.mrb[0].mxu0
        %1397 = vmatprep.mubr.bf16.mxu0 0
        %1398 = vmatmul.mubr.bf16.gmra.mrb[0].mxu0 %v1190
        %v1399 = vpop.f32.mrb[0].mxu0
        %v1400 = vadd.f32 %v1114, %v1399
        %v1401 = vpop.f32.mrb[0].mxu0
        %v1402 = vpop.f32.mrb[0].mxu0
        %v1403 = vadd.f32 %v1114, %v1402
        %v1404 = vpop.f32.mrb[0].mxu0
        %1405 = vmatprep.mubr.bf16.mxu0 0
        %1406 = vmatmul.mubr.bf16.gmra.mrb[0].mxu0 %v1193
        %v1407 = vpop.f32.mrb[0].mxu0
        %v1408 = vadd.f32 %v1114, %v1407
        %v1409 = vpop.f32.mrb[0].mxu0
        %v1410 = vpop.f32.mrb[0].mxu0
        %v1411 = vadd.f32 %v1114, %v1410
        %v1412 = vpop.f32.mrb[0].mxu0
        %1413 = vmatprep.mubr.bf16.mxu0 0
        %1414 = vmatmul.mubr.bf16.gmra.mrb[0].mxu0 %v1196
        %v1415 = vpop.f32.mrb[0].mxu0
        %v1416 = vadd.f32 %v1114, %v1415
        %v1417 = vpop.f32.mrb[0].mxu0
        %v1418 = vpop.f32.mrb[0].mxu0
        %v1419 = vadd.f32 %v1114, %v1418
        %v1420 = vpop.f32.mrb[0].mxu0
        %1421 = vmatprep.mubr.bf16.mxu0 0
        %1422 = vmatmul.mubr.bf16.gmra.mrb[0].mxu0 %v1199
        %v1423 = vpop.f32.mrb[0].mxu0
        %v1424 = vadd.f32 %v1114, %v1423
        %v1425 = vpop.f32.mrb[0].mxu0
        %v1426 = vpop.f32.mrb[0].mxu0
        %v1427 = vadd.f32 %v1114, %v1426
        %v1428 = vpop.f32.mrb[0].mxu0
        %1429 = vmatprep.mubr.bf16.mxu0 0
        %1430 = vmatmul.mubr.bf16.gmra.mrb[0].mxu0 %v1202
        %v1431 = vpop.f32.mrb[0].mxu0
        %v1432 = vadd.f32 %v1114, %v1431
        %v1433 = vpop.f32.mrb[0].mxu0
        %v1434 = vpop.f32.mrb[0].mxu0
        %v1435 = vadd.f32 %v1114, %v1434
        %v1436 = vpop.f32.mrb[0].mxu0
        %1437 = vmatprep.mubr.bf16.mxu0 0
        %1438 = vmatmul.mubr.bf16.gmra.mrb[0].mxu0 %v1205
        %v1439 = vpop.f32.mrb[0].mxu0
        %v1440 = vadd.f32 %v1114, %v1439
        %v1441 = vpop.f32.mrb[0].mxu0
        %v1442 = vpop.f32.mrb[0].mxu0
        %v1443 = vadd.f32 %v1114, %v1442
        %v1444 = vpop.f32.mrb[0].mxu0
        %1445 = vmatprep.mubr.bf16.mxu0 0
        %1446 = vmatmul.mubr.bf16.gmra.mrb[0].mxu0 %v1208
        %v1447 = vpop.f32.mrb[0].mxu0
        %v1448 = vadd.f32 %v1114, %v1447
        %v1449 = vpop.f32.mrb[0].mxu0
        %v1450 = vpop.f32.mrb[0].mxu0
        %v1451 = vadd.f32 %v1114, %v1450
        %v1452 = vpop.f32.mrb[0].mxu0
        %1453 = vmatprep.mubr.bf16.mxu0 0
        %1454 = vmatmul.mubr.bf16.gmra.mrb[0].mxu0 %v1211
        %v1455 = vpop.f32.mrb[0].mxu0
        %v1456 = vadd.f32 %v1114, %v1455
        %v1457 = vpop.f32.mrb[0].mxu0
        %v1458 = vpop.f32.mrb[0].mxu0
        %v1459 = vadd.f32 %v1114, %v1458
        %v1460 = vpop.f32.mrb[0].mxu0
        %1461 = vmatprep.mubr.bf16.mxu0 0
        %1462 = vmatmul.mubr.bf16.gmra.mrb[0].mxu0 %v1214
        %v1463 = vpop.f32.mrb[0].mxu0
        %v1464 = vadd.f32 %v1114, %v1463
        %v1465 = vpop.f32.mrb[0].mxu0
        %v1466 = vpop.f32.mrb[0].mxu0
        %v1467 = vadd.f32 %v1114, %v1466
        %v1468 = vpop.f32.mrb[0].mxu0
        %1469 = vmatprep.mubr.bf16.mxu0 0
        %1470 = vmatmul.mubr.bf16.gmra.mrb[0].mxu0 %v1217
        %v1471 = vpop.f32.mrb[0].mxu0
        %v1472 = vadd.f32 %v1114, %v1471
        %v1473 = vpop.f32.mrb[0].mxu0
        %v1474 = vpop.f32.mrb[0].mxu0
        %v1475 = vadd.f32 %v1114, %v1474
        %v1476 = vpop.f32.mrb[0].mxu0
        %1477 = vmatprep.mubr.bf16.mxu0 0
        %1478 = vmatmul.mubr.bf16.gmra.mrb[0].mxu0 %v1220
        %v1479 = vpop.f32.mrb[0].mxu0
        %v1480 = vadd.f32 %v1114, %v1479
        %v1481 = vpop.f32.mrb[0].mxu0
        %v1482 = vpop.f32.mrb[0].mxu0
        %v1483 = vadd.f32 %v1114, %v1482
        %v1484 = vpop.f32.mrb[0].mxu0
        %1485 = vmatprep.mubr.bf16.mxu0 0
        %1486 = vmatmul.mubr.bf16.gmra.mrb[0].mxu0 %v1223
        %v1487 = vpop.f32.mrb[0].mxu0
        %v1488 = vadd.f32 %v1114, %v1487
        %v1489 = vpop.f32.mrb[0].mxu0
        %v1490 = vpop.f32.mrb[0].mxu0
        %v1491 = vadd.f32 %v1114, %v1490
        %v1492 = vpop.f32.mrb[0].mxu0
        %1493 = vmatprep.mubr.bf16.mxu0 0
        %1494 = vmatmul.mubr.bf16.gmra.mrb[0].mxu0 %v1226
        %v1495 = vpop.f32.mrb[0].mxu0
        %v1496 = vadd.f32 %v1114, %v1495
        %v1497 = vpop.f32.mrb[0].mxu0
        %v1498 = vpop.f32.mrb[0].mxu0
        %v1499 = vadd.f32 %v1114, %v1498
        %v1500 = vpop.f32.mrb[0].mxu0
        %1501 = vmatprep.mubr.bf16.mxu0 0
        %1502 = vmatmul.mubr.bf16.gmra.mrb[0].mxu0 %v1229
        %v1503 = vpop.f32.mrb[0].mxu0
        %v1504 = vadd.f32 %v1114, %v1503
        %v1505 = vpop.f32.mrb[0].mxu0
        %v1506 = vpop.f32.mrb[0].mxu0
        %v1507 = vadd.f32 %v1114, %v1506
        %v1508 = vpop.f32.mrb[0].mxu0
        %1509 = vmatprep.mubr.bf16.mxu0 0
        %1510 = vmatmul.mubr.bf16.gmra.mrb[0].mxu0 %v1232
        %v1511 = vpop.f32.mrb[0].mxu0
        %v1512 = vadd.f32 %v1114, %v1511
        %v1513 = vpop.f32.mrb[0].mxu0
        %v1514 = vpop.f32.mrb[0].mxu0
        %v1515 = vadd.f32 %v1114, %v1514
        %v1516 = vpop.f32.mrb[0].mxu0
        %1517 = vmatprep.mubr.bf16.mxu0 0
        %1518 = vmatmul.mubr.bf16.gmra.mrb[0].mxu0 %v1235
        %v1519 = vpop.f32.mrb[0].mxu0
        %v1520 = vadd.f32 %v1114, %v1519
        %v1521 = vpop.f32.mrb[0].mxu0
        %v1522 = vpop.f32.mrb[0].mxu0
        %v1523 = vadd.f32 %v1114, %v1522
        %v1524 = vpop.f32.mrb[0].mxu0
        %1525 = vdwg.mxu0
        %v1526 = vmax.f32 %v1272, 0.0
        %v1527 = vmax.f32 %v1275, 0.0
        %v1528 = vmax.f32 %v1280, 0.0
        %v1529 = vmax.f32 %v1283, 0.0
        %v1530 = vmax.f32 %v1288, 0.0
        %v1531 = vmax.f32 %v1291, 0.0
        %v1532 = vmax.f32 %v1296, 0.0
        %v1533 = vmax.f32 %v1299, 0.0
        %v1534 = vmax.f32 %v1304, 0.0
        %v1535 = vmax.f32 %v1307, 0.0
        %v1536 = vmax.f32 %v1312, 0.0
        %v1537 = vmax.f32 %v1315, 0.0
        %v1538 = vmax.f32 %v1320, 0.0
        %v1539 = vmax.f32 %v1323, 0.0
        %v1540 = vmax.f32 %v1328, 0.0
        %v1541 = vmax.f32 %v1331, 0.0
        %v1542 = vmax.f32 %v1336, 0.0
        %v1543 = vmax.f32 %v1339, 0.0
        %v1544 = vmax.f32 %v1344, 0.0
        %v1545 = vmax.f32 %v1347, 0.0
        %v1546 = vmax.f32 %v1352, 0.0
        %v1547 = vmax.f32 %v1355, 0.0
        %v1548 = vmax.f32 %v1360, 0.0
        %v1549 = vmax.f32 %v1363, 0.0
        %v1550 = vmax.f32 %v1368, 0.0
        %v1551 = vmax.f32 %v1371, 0.0
        %v1552 = vmax.f32 %v1376, 0.0
        %v1553 = vmax.f32 %v1379, 0.0
        %v1554 = vmax.f32 %v1384, 0.0
        %v1555 = vmax.f32 %v1387, 0.0
        %v1556 = vmax.f32 %v1392, 0.0
        %v1557 = vmax.f32 %v1395, 0.0
        %v1558 = vmax.f32 %v1400, 0.0
        %v1559 = vmax.f32 %v1403, 0.0
        %v1560 = vmax.f32 %v1408, 0.0
        %v1561 = vmax.f32 %v1411, 0.0
        %v1562 = vmax.f32 %v1416, 0.0
        %v1563 = vmax.f32 %v1419, 0.0
        %v1564 = vmax.f32 %v1424, 0.0
        %v1565 = vmax.f32 %v1427, 0.0
        %v1566 = vmax.f32 %v1432, 0.0
        %v1567 = vmax.f32 %v1435, 0.0
        %v1568 = vmax.f32 %v1440, 0.0
        %v1569 = vmax.f32 %v1443, 0.0
        %v1570 = vmax.f32 %v1448, 0.0
        %v1571 = vmax.f32 %v1451, 0.0
        %v1572 = vmax.f32 %v1456, 0.0
        %v1573 = vmax.f32 %v1459, 0.0
        %v1574 = vmax.f32 %v1464, 0.0
        %v1575 = vmax.f32 %v1467, 0.0
        %v1576 = vmax.f32 %v1472, 0.0
        %v1577 = vmax.f32 %v1475, 0.0
        %v1578 = vmax.f32 %v1480, 0.0
        %v1579 = vmax.f32 %v1483, 0.0
        %v1580 = vmax.f32 %v1488, 0.0
        %v1581 = vmax.f32 %v1491, 0.0
        %v1582 = vmax.f32 %v1496, 0.0
        %v1583 = vmax.f32 %v1499, 0.0
        %v1584 = vmax.f32 %v1504, 0.0
        %v1585 = vmax.f32 %v1507, 0.0
        %v1586 = vmax.f32 %v1512, 0.0
        %v1587 = vmax.f32 %v1515, 0.0
        %v1588 = vmax.f32 %v1520, 0.0
        %v1589 = vmax.f32 %v1523, 0.0
        %v1590 = vpack.c.bf16 %v1527, %v1526
        %v1591 = vpack.c.bf16 %v1529, %v1528
        %v1592 = vpack.c.bf16 %v1531, %v1530
        %v1593 = vpack.c.bf16 %v1533, %v1532
        %v1594 = vpack.c.bf16 %v1535, %v1534
        %v1595 = vpack.c.bf16 %v1537, %v1536
        %v1596 = vpack.c.bf16 %v1539, %v1538
        %v1597 = vpack.c.bf16 %v1541, %v1540
        %v1598 = vpack.c.bf16 %v1543, %v1542
        %v1599 = vpack.c.bf16 %v1545, %v1544
        %v1600 = vpack.c.bf16 %v1547, %v1546
        %v1601 = vpack.c.bf16 %v1549, %v1548
        %v1602 = vpack.c.bf16 %v1551, %v1550
        %v1603 = vpack.c.bf16 %v1553, %v1552
        %v1604 = vpack.c.bf16 %v1555, %v1554
        %v1605 = vpack.c.bf16 %v1557, %v1556
        %v1606 = vpack.c.bf16 %v1559, %v1558
        %v1607 = vpack.c.bf16 %v1561, %v1560
        %v1608 = vpack.c.bf16 %v1563, %v1562
        %v1609 = vpack.c.bf16 %v1565, %v1564
        %v1610 = vpack.c.bf16 %v1567, %v1566
        %v1611 = vpack.c.bf16 %v1569, %v1568
        %v1612 = vpack.c.bf16 %v1571, %v1570
        %v1613 = vpack.c.bf16 %v1573, %v1572
        %v1614 = vpack.c.bf16 %v1575, %v1574
        %v1615 = vpack.c.bf16 %v1577, %v1576
        %v1616 = vpack.c.bf16 %v1579, %v1578
        %v1617 = vpack.c.bf16 %v1581, %v1580
        %v1618 = vpack.c.bf16 %v1583, %v1582
        %v1619 = vpack.c.bf16 %v1585, %v1584
        %v1620 = vpack.c.bf16 %v1587, %v1586
        %v1621 = vpack.c.bf16 %v1589, %v1588
        %v1622 = vld [vmem:[%s5] sm:$0xff]
        %v1623 = vld [vmem:[%s5 + $0x8] sm:$0xff]
        %v1624 = vld [vmem:[%s5 + $0x10] sm:$0xff]
        %v1625 = vld [vmem:[%s5 + $0x18] sm:$0xff]
        %v1626 = vld [vmem:[%s5 + $0x20] sm:$0xff]
        %v1627 = vld [vmem:[%s5 + $0x28] sm:$0xff]
        %v1628 = vld [vmem:[%s5 + $0x30] sm:$0xff]
        %v1629 = vld [vmem:[%s5 + $0x38] sm:$0xff]
        %v1630 = vld [vmem:[%s5 + $0x40] sm:$0xff]
        %v1631 = vld [vmem:[%s5 + $0x48] sm:$0xff]
        %v1632 = vld [vmem:[%s5 + $0x50] sm:$0xff]
        %v1633 = vld [vmem:[%s5 + $0x58] sm:$0xff]
        %v1634 = vld [vmem:[%s5 + $0x60] sm:$0xff]
        %v1635 = vld [vmem:[%s5 + $0x68] sm:$0xff]
        %v1636 = vld [vmem:[%s5 + $0x70] sm:$0xff]
        %v1637 = vld [vmem:[%s5 + $0x78] sm:$0xff]
        %v1638 = vld [vmem:[%s6] sm:$0x3]
        %v1640 = vlaneseq
        %v1641 = vshrl.u32 %v1640, 7
        %v1642 = vsub.s32 0, %v1641
        %v1643 = vrot.slane %v1638, %v1642
        %v1644 = vlaneseq
        %v1645 = vshrl.u32 %v1644, 7
        %v1646 = vsub.s32 1, %v1645
        %v1647 = vrot.slane %v1638, %v1646
        %v1666 = vunpack.c.l.b16 %v1622
        %v1667 = vunpack.c.h.b16 %v1622
        %v1668 = vunpack.c.l.b16 %v1623
        %v1669 = vunpack.c.h.b16 %v1623
        %v1670 = vunpack.c.l.b16 %v1624
        %v1671 = vunpack.c.h.b16 %v1624
        %v1672 = vunpack.c.l.b16 %v1625
        %v1673 = vunpack.c.h.b16 %v1625
        %v1674 = vunpack.c.l.b16 %v1626
        %v1675 = vunpack.c.h.b16 %v1626
        %v1676 = vunpack.c.l.b16 %v1627
        %v1677 = vunpack.c.h.b16 %v1627
        %v1678 = vunpack.c.l.b16 %v1628
        %v1679 = vunpack.c.h.b16 %v1628
        %v1680 = vunpack.c.l.b16 %v1629
        %v1681 = vunpack.c.h.b16 %v1629
        %v1682 = vunpack.c.l.b16 %v1630
        %v1683 = vunpack.c.h.b16 %v1630
        %v1684 = vunpack.c.l.b16 %v1631
        %v1685 = vunpack.c.h.b16 %v1631
        %v1686 = vunpack.c.l.b16 %v1632
        %v1687 = vunpack.c.h.b16 %v1632
        %v1688 = vunpack.c.l.b16 %v1633
        %v1689 = vunpack.c.h.b16 %v1633
        %v1690 = vunpack.c.l.b16 %v1634
        %v1691 = vunpack.c.h.b16 %v1634
        %v1692 = vunpack.c.l.b16 %v1635
        %v1693 = vunpack.c.h.b16 %v1635
        %v1694 = vunpack.c.l.b16 %v1636
        %v1695 = vunpack.c.h.b16 %v1636
        %v1696 = vunpack.c.l.b16 %v1637
        %v1697 = vunpack.c.h.b16 %v1637
        %v1698 = vpack.c.b16 %v1668, %v1666
        %v1699 = vpack.c.b16 %v1669, %v1667
        %v1700 = vpack.c.b16 %v1672, %v1670
        %v1701 = vpack.c.b16 %v1673, %v1671
        %v1702 = vpack.c.b16 %v1676, %v1674
        %v1703 = vpack.c.b16 %v1677, %v1675
        %v1704 = vpack.c.b16 %v1680, %v1678
        %v1705 = vpack.c.b16 %v1681, %v1679
        %v1706 = vpack.c.b16 %v1684, %v1682
        %v1707 = vpack.c.b16 %v1685, %v1683
        %v1708 = vpack.c.b16 %v1688, %v1686
        %v1709 = vpack.c.b16 %v1689, %v1687
        %v1710 = vpack.c.b16 %v1692, %v1690
        %v1711 = vpack.c.b16 %v1693, %v1691
        %v1712 = vpack.c.b16 %v1696, %v1694
        %v1713 = vpack.c.b16 %v1697, %v1695
        %1730 = vmatprep.subr.bf16.mxu0 %v1699
        %1731 = vmatpush1.bf16.msra.mxu0 %v1698
        %1732 = vmatprep.subr.bf16.mxu0 %v1701
        %1733 = vmatpush1.bf16.msra.mxu0 %v1700
        %1734 = vmatprep.subr.bf16.mxu0 %v1703
        %1735 = vmatpush1.bf16.msra.mxu0 %v1702
        %1736 = vmatprep.subr.bf16.mxu0 %v1705
        %1737 = vmatpush1.bf16.msra.mxu0 %v1704
        %1738 = vmatprep.subr.bf16.mxu0 %v1707
        %1739 = vmatpush1.bf16.msra.mxu0 %v1706
        %1740 = vmatprep.subr.bf16.mxu0 %v1709
        %1741 = vmatpush1.bf16.msra.mxu0 %v1708
        %1742 = vmatprep.subr.bf16.mxu0 %v1711
        %1743 = vmatpush1.bf16.msra.mxu0 %v1710
        %1744 = vmatprep.subr.bf16.mxu0 %v1713
        %1745 = vmatpush1.bf16.msra.mxu0 %v1712
        %1746 = vmatprep.subr.bf16.mxu0 0
        %1747 = vmatpush1.bf16.msra.mxu0 0
        %1748 = vmatprep.subr.bf16.mxu0 0
        %1749 = vmatpush1.bf16.msra.mxu0 0
        %1750 = vmatprep.subr.bf16.mxu0 0
        %1751 = vmatpush1.bf16.msra.mxu0 0
        %1752 = vmatprep.subr.bf16.mxu0 0
        %1753 = vmatpush1.bf16.msra.mxu0 0
        %1754 = vmatprep.subr.bf16.mxu0 0
        %1755 = vmatpush1.bf16.msra.mxu0 0
        %1756 = vmatprep.subr.bf16.mxu0 0
        %1757 = vmatpush1.bf16.msra.mxu0 0
        %1758 = vmatprep.subr.bf16.mxu0 0
        %1759 = vmatpush1.bf16.msra.mxu0 0
        %1760 = vmatprep.subr.bf16.mxu0 0
        %1761 = vmatpush1.bf16.msra.mxu0 0
        %1762 = vmatprep.mubr.bf16.mxu0 0
        %1763 = vmatmul.mubr.bf16.gmra.mrb[0].mxu0 %v1590
        %v1764 = vpop.f32.mrb[0].mxu0
        %v1765 = vadd.f32 %v1643, %v1764
        %v1766 = vpop.f32.mrb[0].mxu0
        %v1767 = vadd.f32 %v1647, %v1766
        %v1768 = vpop.f32.mrb[0].mxu0
        %v1769 = vadd.f32 %v1643, %v1768
        %v1770 = vpop.f32.mrb[0].mxu0
        %v1771 = vadd.f32 %v1647, %v1770
        %1772 = vmatprep.mubr.bf16.mxu0 0
        %1773 = vmatmul.mubr.bf16.gmra.mrb[0].mxu0 %v1591
        %v1774 = vpop.f32.mrb[0].mxu0
        %v1775 = vadd.f32 %v1643, %v1774
        %v1776 = vpop.f32.mrb[0].mxu0
        %v1777 = vadd.f32 %v1647, %v1776
        %v1778 = vpop.f32.mrb[0].mxu0
        %v1779 = vadd.f32 %v1643, %v1778
        %v1780 = vpop.f32.mrb[0].mxu0
        %v1781 = vadd.f32 %v1647, %v1780
        %1782 = vmatprep.mubr.bf16.mxu0 0
        %1783 = vmatmul.mubr.bf16.gmra.mrb[0].mxu0 %v1592
        %v1784 = vpop.f32.mrb[0].mxu0
        %v1785 = vadd.f32 %v1643, %v1784
        %v1786 = vpop.f32.mrb[0].mxu0
        %v1787 = vadd.f32 %v1647, %v1786
        %v1788 = vpop.f32.mrb[0].mxu0
        %v1789 = vadd.f32 %v1643, %v1788
        %v1790 = vpop.f32.mrb[0].mxu0
        %v1791 = vadd.f32 %v1647, %v1790
        %1792 = vmatprep.mubr.bf16.mxu0 0
        %1793 = vmatmul.mubr.bf16.gmra.mrb[0].mxu0 %v1593
        %v1794 = vpop.f32.mrb[0].mxu0
        %v1795 = vadd.f32 %v1643, %v1794
        %v1796 = vpop.f32.mrb[0].mxu0
        %v1797 = vadd.f32 %v1647, %v1796
        %v1798 = vpop.f32.mrb[0].mxu0
        %v1799 = vadd.f32 %v1643, %v1798
        %v1800 = vpop.f32.mrb[0].mxu0
        %v1801 = vadd.f32 %v1647, %v1800
        %1802 = vmatprep.mubr.bf16.mxu0 0
        %1803 = vmatmul.mubr.bf16.gmra.mrb[0].mxu0 %v1594
        %v1804 = vpop.f32.mrb[0].mxu0
        %v1805 = vadd.f32 %v1643, %v1804
        %v1806 = vpop.f32.mrb[0].mxu0
        %v1807 = vadd.f32 %v1647, %v1806
        %v1808 = vpop.f32.mrb[0].mxu0
        %v1809 = vadd.f32 %v1643, %v1808
        %v1810 = vpop.f32.mrb[0].mxu0
        %v1811 = vadd.f32 %v1647, %v1810
        %1812 = vmatprep.mubr.bf16.mxu0 0
        %1813 = vmatmul.mubr.bf16.gmra.mrb[0].mxu0 %v1595
        %v1814 = vpop.f32.mrb[0].mxu0
        %v1815 = vadd.f32 %v1643, %v1814
        %v1816 = vpop.f32.mrb[0].mxu0
        %v1817 = vadd.f32 %v1647, %v1816
        %v1818 = vpop.f32.mrb[0].mxu0
        %v1819 = vadd.f32 %v1643, %v1818
        %v1820 = vpop.f32.mrb[0].mxu0
        %v1821 = vadd.f32 %v1647, %v1820
        %1822 = vmatprep.mubr.bf16.mxu0 0
        %1823 = vmatmul.mubr.bf16.gmra.mrb[0].mxu0 %v1596
        %v1824 = vpop.f32.mrb[0].mxu0
        %v1825 = vadd.f32 %v1643, %v1824
        %v1826 = vpop.f32.mrb[0].mxu0
        %v1827 = vadd.f32 %v1647, %v1826
        %v1828 = vpop.f32.mrb[0].mxu0
        %v1829 = vadd.f32 %v1643, %v1828
        %v1830 = vpop.f32.mrb[0].mxu0
        %v1831 = vadd.f32 %v1647, %v1830
        %1832 = vmatprep.mubr.bf16.mxu0 0
        %1833 = vmatmul.mubr.bf16.gmra.mrb[0].mxu0 %v1597
        %v1834 = vpop.f32.mrb[0].mxu0
        %v1835 = vadd.f32 %v1643, %v1834
        %v1836 = vpop.f32.mrb[0].mxu0
        %v1837 = vadd.f32 %v1647, %v1836
        %v1838 = vpop.f32.mrb[0].mxu0
        %v1839 = vadd.f32 %v1643, %v1838
        %v1840 = vpop.f32.mrb[0].mxu0
        %v1841 = vadd.f32 %v1647, %v1840
        %1842 = vmatprep.mubr.bf16.mxu0 0
        %1843 = vmatmul.mubr.bf16.gmra.mrb[0].mxu0 %v1598
        %v1844 = vpop.f32.mrb[0].mxu0
        %v1845 = vadd.f32 %v1643, %v1844
        %v1846 = vpop.f32.mrb[0].mxu0
        %v1847 = vadd.f32 %v1647, %v1846
        %v1848 = vpop.f32.mrb[0].mxu0
        %v1849 = vadd.f32 %v1643, %v1848
        %v1850 = vpop.f32.mrb[0].mxu0
        %v1851 = vadd.f32 %v1647, %v1850
        %1852 = vmatprep.mubr.bf16.mxu0 0
        %1853 = vmatmul.mubr.bf16.gmra.mrb[0].mxu0 %v1599
        %v1854 = vpop.f32.mrb[0].mxu0
        %v1855 = vadd.f32 %v1643, %v1854
        %v1856 = vpop.f32.mrb[0].mxu0
        %v1857 = vadd.f32 %v1647, %v1856
        %v1858 = vpop.f32.mrb[0].mxu0
        %v1859 = vadd.f32 %v1643, %v1858
        %v1860 = vpop.f32.mrb[0].mxu0
        %v1861 = vadd.f32 %v1647, %v1860
        %1862 = vmatprep.mubr.bf16.mxu0 0
        %1863 = vmatmul.mubr.bf16.gmra.mrb[0].mxu0 %v1600
        %v1864 = vpop.f32.mrb[0].mxu0
        %v1865 = vadd.f32 %v1643, %v1864
        %v1866 = vpop.f32.mrb[0].mxu0
        %v1867 = vadd.f32 %v1647, %v1866
        %v1868 = vpop.f32.mrb[0].mxu0
        %v1869 = vadd.f32 %v1643, %v1868
        %v1870 = vpop.f32.mrb[0].mxu0
        %v1871 = vadd.f32 %v1647, %v1870
        %1872 = vmatprep.mubr.bf16.mxu0 0
        %1873 = vmatmul.mubr.bf16.gmra.mrb[0].mxu0 %v1601
        %v1874 = vpop.f32.mrb[0].mxu0
        %v1875 = vadd.f32 %v1643, %v1874
        %v1876 = vpop.f32.mrb[0].mxu0
        %v1877 = vadd.f32 %v1647, %v1876
        %v1878 = vpop.f32.mrb[0].mxu0
        %v1879 = vadd.f32 %v1643, %v1878
        %v1880 = vpop.f32.mrb[0].mxu0
        %v1881 = vadd.f32 %v1647, %v1880
        %1882 = vmatprep.mubr.bf16.mxu0 0
        %1883 = vmatmul.mubr.bf16.gmra.mrb[0].mxu0 %v1602
        %v1884 = vpop.f32.mrb[0].mxu0
        %v1885 = vadd.f32 %v1643, %v1884
        %v1886 = vpop.f32.mrb[0].mxu0
        %v1887 = vadd.f32 %v1647, %v1886
        %v1888 = vpop.f32.mrb[0].mxu0
        %v1889 = vadd.f32 %v1643, %v1888
        %v1890 = vpop.f32.mrb[0].mxu0
        %v1891 = vadd.f32 %v1647, %v1890
        %1892 = vmatprep.mubr.bf16.mxu0 0
        %1893 = vmatmul.mubr.bf16.gmra.mrb[0].mxu0 %v1603
        %v1894 = vpop.f32.mrb[0].mxu0
        %v1895 = vadd.f32 %v1643, %v1894
        %v1896 = vpop.f32.mrb[0].mxu0
        %v1897 = vadd.f32 %v1647, %v1896
        %v1898 = vpop.f32.mrb[0].mxu0
        %v1899 = vadd.f32 %v1643, %v1898
        %v1900 = vpop.f32.mrb[0].mxu0
        %v1901 = vadd.f32 %v1647, %v1900
        %1902 = vmatprep.mubr.bf16.mxu0 0
        %1903 = vmatmul.mubr.bf16.gmra.mrb[0].mxu0 %v1604
        %v1904 = vpop.f32.mrb[0].mxu0
        %v1905 = vadd.f32 %v1643, %v1904
        %v1906 = vpop.f32.mrb[0].mxu0
        %v1907 = vadd.f32 %v1647, %v1906
        %v1908 = vpop.f32.mrb[0].mxu0
        %v1909 = vadd.f32 %v1643, %v1908
        %v1910 = vpop.f32.mrb[0].mxu0
        %v1911 = vadd.f32 %v1647, %v1910
        %1912 = vmatprep.mubr.bf16.mxu0 0
        %1913 = vmatmul.mubr.bf16.gmra.mrb[0].mxu0 %v1605
        %v1914 = vpop.f32.mrb[0].mxu0
        %v1915 = vadd.f32 %v1643, %v1914
        %v1916 = vpop.f32.mrb[0].mxu0
        %v1917 = vadd.f32 %v1647, %v1916
        %v1918 = vpop.f32.mrb[0].mxu0
        %v1919 = vadd.f32 %v1643, %v1918
        %v1920 = vpop.f32.mrb[0].mxu0
        %v1921 = vadd.f32 %v1647, %v1920
        %1922 = vmatprep.mubr.bf16.mxu0 0
        %1923 = vmatmul.mubr.bf16.gmra.mrb[0].mxu0 %v1606
        %v1924 = vpop.f32.mrb[0].mxu0
        %v1925 = vadd.f32 %v1643, %v1924
        %v1926 = vpop.f32.mrb[0].mxu0
        %v1927 = vadd.f32 %v1647, %v1926
        %v1928 = vpop.f32.mrb[0].mxu0
        %v1929 = vadd.f32 %v1643, %v1928
        %v1930 = vpop.f32.mrb[0].mxu0
        %v1931 = vadd.f32 %v1647, %v1930
        %1932 = vmatprep.mubr.bf16.mxu0 0
        %1933 = vmatmul.mubr.bf16.gmra.mrb[0].mxu0 %v1607
        %v1934 = vpop.f32.mrb[0].mxu0
        %v1935 = vadd.f32 %v1643, %v1934
        %v1936 = vpop.f32.mrb[0].mxu0
        %v1937 = vadd.f32 %v1647, %v1936
        %v1938 = vpop.f32.mrb[0].mxu0
        %v1939 = vadd.f32 %v1643, %v1938
        %v1940 = vpop.f32.mrb[0].mxu0
        %v1941 = vadd.f32 %v1647, %v1940
        %1942 = vmatprep.mubr.bf16.mxu0 0
        %1943 = vmatmul.mubr.bf16.gmra.mrb[0].mxu0 %v1608
        %v1944 = vpop.f32.mrb[0].mxu0
        %v1945 = vadd.f32 %v1643, %v1944
        %v1946 = vpop.f32.mrb[0].mxu0
        %v1947 = vadd.f32 %v1647, %v1946
        %v1948 = vpop.f32.mrb[0].mxu0
        %v1949 = vadd.f32 %v1643, %v1948
        %v1950 = vpop.f32.mrb[0].mxu0
        %v1951 = vadd.f32 %v1647, %v1950
        %1952 = vmatprep.mubr.bf16.mxu0 0
        %1953 = vmatmul.mubr.bf16.gmra.mrb[0].mxu0 %v1609
        %v1954 = vpop.f32.mrb[0].mxu0
        %v1955 = vadd.f32 %v1643, %v1954
        %v1956 = vpop.f32.mrb[0].mxu0
        %v1957 = vadd.f32 %v1647, %v1956
        %v1958 = vpop.f32.mrb[0].mxu0
        %v1959 = vadd.f32 %v1643, %v1958
        %v1960 = vpop.f32.mrb[0].mxu0
        %v1961 = vadd.f32 %v1647, %v1960
        %1962 = vmatprep.mubr.bf16.mxu0 0
        %1963 = vmatmul.mubr.bf16.gmra.mrb[0].mxu0 %v1610
        %v1964 = vpop.f32.mrb[0].mxu0
        %v1965 = vadd.f32 %v1643, %v1964
        %v1966 = vpop.f32.mrb[0].mxu0
        %v1967 = vadd.f32 %v1647, %v1966
        %v1968 = vpop.f32.mrb[0].mxu0
        %v1969 = vadd.f32 %v1643, %v1968
        %v1970 = vpop.f32.mrb[0].mxu0
        %v1971 = vadd.f32 %v1647, %v1970
        %1972 = vmatprep.mubr.bf16.mxu0 0
        %1973 = vmatmul.mubr.bf16.gmra.mrb[0].mxu0 %v1611
        %v1974 = vpop.f32.mrb[0].mxu0
        %v1975 = vadd.f32 %v1643, %v1974
        %v1976 = vpop.f32.mrb[0].mxu0
        %v1977 = vadd.f32 %v1647, %v1976
        %v1978 = vpop.f32.mrb[0].mxu0
        %v1979 = vadd.f32 %v1643, %v1978
        %v1980 = vpop.f32.mrb[0].mxu0
        %v1981 = vadd.f32 %v1647, %v1980
        %1982 = vmatprep.mubr.bf16.mxu0 0
        %1983 = vmatmul.mubr.bf16.gmra.mrb[0].mxu0 %v1612
        %v1984 = vpop.f32.mrb[0].mxu0
        %v1985 = vadd.f32 %v1643, %v1984
        %v1986 = vpop.f32.mrb[0].mxu0
        %v1987 = vadd.f32 %v1647, %v1986
        %v1988 = vpop.f32.mrb[0].mxu0
        %v1989 = vadd.f32 %v1643, %v1988
        %v1990 = vpop.f32.mrb[0].mxu0
        %v1991 = vadd.f32 %v1647, %v1990
        %1992 = vmatprep.mubr.bf16.mxu0 0
        %1993 = vmatmul.mubr.bf16.gmra.mrb[0].mxu0 %v1613
        %v1994 = vpop.f32.mrb[0].mxu0
        %v1995 = vadd.f32 %v1643, %v1994
        %v1996 = vpop.f32.mrb[0].mxu0
        %v1997 = vadd.f32 %v1647, %v1996
        %v1998 = vpop.f32.mrb[0].mxu0
        %v1999 = vadd.f32 %v1643, %v1998
        %v2000 = vpop.f32.mrb[0].mxu0
        %v2001 = vadd.f32 %v1647, %v2000
        %2002 = vmatprep.mubr.bf16.mxu0 0
        %2003 = vmatmul.mubr.bf16.gmra.mrb[0].mxu0 %v1614
        %v2004 = vpop.f32.mrb[0].mxu0
        %v2005 = vadd.f32 %v1643, %v2004
        %v2006 = vpop.f32.mrb[0].mxu0
        %v2007 = vadd.f32 %v1647, %v2006
        %v2008 = vpop.f32.mrb[0].mxu0
        %v2009 = vadd.f32 %v1643, %v2008
        %v2010 = vpop.f32.mrb[0].mxu0
        %v2011 = vadd.f32 %v1647, %v2010
        %2012 = vmatprep.mubr.bf16.mxu0 0
        %2013 = vmatmul.mubr.bf16.gmra.mrb[0].mxu0 %v1615
        %v2014 = vpop.f32.mrb[0].mxu0
        %v2015 = vadd.f32 %v1643, %v2014
        %v2016 = vpop.f32.mrb[0].mxu0
        %v2017 = vadd.f32 %v1647, %v2016
        %v2018 = vpop.f32.mrb[0].mxu0
        %v2019 = vadd.f32 %v1643, %v2018
        %v2020 = vpop.f32.mrb[0].mxu0
        %v2021 = vadd.f32 %v1647, %v2020
        %2022 = vmatprep.mubr.bf16.mxu0 0
        %2023 = vmatmul.mubr.bf16.gmra.mrb[0].mxu0 %v1616
        %v2024 = vpop.f32.mrb[0].mxu0
        %v2025 = vadd.f32 %v1643, %v2024
        %v2026 = vpop.f32.mrb[0].mxu0
        %v2027 = vadd.f32 %v1647, %v2026
        %v2028 = vpop.f32.mrb[0].mxu0
        %v2029 = vadd.f32 %v1643, %v2028
        %v2030 = vpop.f32.mrb[0].mxu0
        %v2031 = vadd.f32 %v1647, %v2030
        %2032 = vmatprep.mubr.bf16.mxu0 0
        %2033 = vmatmul.mubr.bf16.gmra.mrb[0].mxu0 %v1617
        %v2034 = vpop.f32.mrb[0].mxu0
        %v2035 = vadd.f32 %v1643, %v2034
        %v2036 = vpop.f32.mrb[0].mxu0
        %v2037 = vadd.f32 %v1647, %v2036
        %v2038 = vpop.f32.mrb[0].mxu0
        %v2039 = vadd.f32 %v1643, %v2038
        %v2040 = vpop.f32.mrb[0].mxu0
        %v2041 = vadd.f32 %v1647, %v2040
        %2042 = vmatprep.mubr.bf16.mxu0 0
        %2043 = vmatmul.mubr.bf16.gmra.mrb[0].mxu0 %v1618
        %v2044 = vpop.f32.mrb[0].mxu0
        %v2045 = vadd.f32 %v1643, %v2044
        %v2046 = vpop.f32.mrb[0].mxu0
        %v2047 = vadd.f32 %v1647, %v2046
        %v2048 = vpop.f32.mrb[0].mxu0
        %v2049 = vadd.f32 %v1643, %v2048
        %v2050 = vpop.f32.mrb[0].mxu0
        %v2051 = vadd.f32 %v1647, %v2050
        %2052 = vmatprep.mubr.bf16.mxu0 0
        %2053 = vmatmul.mubr.bf16.gmra.mrb[0].mxu0 %v1619
        %v2054 = vpop.f32.mrb[0].mxu0
        %v2055 = vadd.f32 %v1643, %v2054
        %v2056 = vpop.f32.mrb[0].mxu0
        %v2057 = vadd.f32 %v1647, %v2056
        %v2058 = vpop.f32.mrb[0].mxu0
        %v2059 = vadd.f32 %v1643, %v2058
        %v2060 = vpop.f32.mrb[0].mxu0
        %v2061 = vadd.f32 %v1647, %v2060
        %2062 = vmatprep.mubr.bf16.mxu0 0
        %2063 = vmatmul.mubr.bf16.gmra.mrb[0].mxu0 %v1620
        %v2064 = vpop.f32.mrb[0].mxu0
        %v2065 = vadd.f32 %v1643, %v2064
        %v2066 = vpop.f32.mrb[0].mxu0
        %v2067 = vadd.f32 %v1647, %v2066
        %v2068 = vpop.f32.mrb[0].mxu0
        %v2069 = vadd.f32 %v1643, %v2068
        %v2070 = vpop.f32.mrb[0].mxu0
        %v2071 = vadd.f32 %v1647, %v2070
        %2072 = vmatprep.mubr.bf16.mxu0 0
        %2073 = vmatmul.mubr.bf16.gmra.mrb[0].mxu0 %v1621
        %v2074 = vpop.f32.mrb[0].mxu0
        %v2075 = vadd.f32 %v1643, %v2074
        %v2076 = vpop.f32.mrb[0].mxu0
        %v2077 = vadd.f32 %v1647, %v2076
        %v2078 = vpop.f32.mrb[0].mxu0
        %v2079 = vadd.f32 %v1643, %v2078
        %v2080 = vpop.f32.mrb[0].mxu0
        %v2081 = vadd.f32 %v1647, %v2080
        %2082 = vdwg.mxu0
        %v2083 = vmax.f32 %v1765, 0.0
        %v2084 = vmax.f32 %v1767, 0.0
        %v2085 = vmax.f32 %v1769, 0.0
        %v2086 = vmax.f32 %v1771, 0.0
        %v2087 = vmax.f32 %v1775, 0.0
        %v2088 = vmax.f32 %v1777, 0.0
        %v2089 = vmax.f32 %v1779, 0.0
        %v2090 = vmax.f32 %v1781, 0.0
        %v2091 = vmax.f32 %v1785, 0.0
        %v2092 = vmax.f32 %v1787, 0.0
        %v2093 = vmax.f32 %v1789, 0.0
        %v2094 = vmax.f32 %v1791, 0.0
        %v2095 = vmax.f32 %v1795, 0.0
        %v2096 = vmax.f32 %v1797, 0.0
        %v2097 = vmax.f32 %v1799, 0.0
        %v2098 = vmax.f32 %v1801, 0.0
        %v2099 = vmax.f32 %v1805, 0.0
        %v2100 = vmax.f32 %v1807, 0.0
        %v2101 = vmax.f32 %v1809, 0.0
        %v2102 = vmax.f32 %v1811, 0.0
        %v2103 = vmax.f32 %v1815, 0.0
        %v2104 = vmax.f32 %v1817, 0.0
        %v2105 = vmax.f32 %v1819, 0.0
        %v2106 = vmax.f32 %v1821, 0.0
        %v2107 = vmax.f32 %v1825, 0.0
        %v2108 = vmax.f32 %v1827, 0.0
        %v2109 = vmax.f32 %v1829, 0.0
        %v2110 = vmax.f32 %v1831, 0.0
        %v2111 = vmax.f32 %v1835, 0.0
        %v2112 = vmax.f32 %v1837, 0.0
        %v2113 = vmax.f32 %v1839, 0.0
        %v2114 = vmax.f32 %v1841, 0.0
        %v2115 = vmax.f32 %v1845, 0.0
        %v2116 = vmax.f32 %v1847, 0.0
        %v2117 = vmax.f32 %v1849, 0.0
        %v2118 = vmax.f32 %v1851, 0.0
        %v2119 = vmax.f32 %v1855, 0.0
        %v2120 = vmax.f32 %v1857, 0.0
        %v2121 = vmax.f32 %v1859, 0.0
        %v2122 = vmax.f32 %v1861, 0.0
        %v2123 = vmax.f32 %v1865, 0.0
        %v2124 = vmax.f32 %v1867, 0.0
        %v2125 = vmax.f32 %v1869, 0.0
        %v2126 = vmax.f32 %v1871, 0.0
        %v2127 = vmax.f32 %v1875, 0.0
        %v2128 = vmax.f32 %v1877, 0.0
        %v2129 = vmax.f32 %v1879, 0.0
        %v2130 = vmax.f32 %v1881, 0.0
        %v2131 = vmax.f32 %v1885, 0.0
        %v2132 = vmax.f32 %v1887, 0.0
        %v2133 = vmax.f32 %v1889, 0.0
        %v2134 = vmax.f32 %v1891, 0.0
        %v2135 = vmax.f32 %v1895, 0.0
        %v2136 = vmax.f32 %v1897, 0.0
        %v2137 = vmax.f32 %v1899, 0.0
        %v2138 = vmax.f32 %v1901, 0.0
        %v2139 = vmax.f32 %v1905, 0.0
        %v2140 = vmax.f32 %v1907, 0.0
        %v2141 = vmax.f32 %v1909, 0.0
        %v2142 = vmax.f32 %v1911, 0.0
        %v2143 = vmax.f32 %v1915, 0.0
        %v2144 = vmax.f32 %v1917, 0.0
        %v2145 = vmax.f32 %v1919, 0.0
        %v2146 = vmax.f32 %v1921, 0.0
        %v2147 = vmax.f32 %v1925, 0.0
        %v2148 = vmax.f32 %v1927, 0.0
        %v2149 = vmax.f32 %v1929, 0.0
        %v2150 = vmax.f32 %v1931, 0.0
        %v2151 = vmax.f32 %v1935, 0.0
        %v2152 = vmax.f32 %v1937, 0.0
        %v2153 = vmax.f32 %v1939, 0.0
        %v2154 = vmax.f32 %v1941, 0.0
        %v2155 = vmax.f32 %v1945, 0.0
        %v2156 = vmax.f32 %v1947, 0.0
        %v2157 = vmax.f32 %v1949, 0.0
        %v2158 = vmax.f32 %v1951, 0.0
        %v2159 = vmax.f32 %v1955, 0.0
        %v2160 = vmax.f32 %v1957, 0.0
        %v2161 = vmax.f32 %v1959, 0.0
        %v2162 = vmax.f32 %v1961, 0.0
        %v2163 = vmax.f32 %v1965, 0.0
        %v2164 = vmax.f32 %v1967, 0.0
        %v2165 = vmax.f32 %v1969, 0.0
        %v2166 = vmax.f32 %v1971, 0.0
        %v2167 = vmax.f32 %v1975, 0.0
        %v2168 = vmax.f32 %v1977, 0.0
        %v2169 = vmax.f32 %v1979, 0.0
        %v2170 = vmax.f32 %v1981, 0.0
        %v2171 = vmax.f32 %v1985, 0.0
        %v2172 = vmax.f32 %v1987, 0.0
        %v2173 = vmax.f32 %v1989, 0.0
        %v2174 = vmax.f32 %v1991, 0.0
        %v2175 = vmax.f32 %v1995, 0.0
        %v2176 = vmax.f32 %v1997, 0.0
        %v2177 = vmax.f32 %v1999, 0.0
        %v2178 = vmax.f32 %v2001, 0.0
        %v2179 = vmax.f32 %v2005, 0.0
        %v2180 = vmax.f32 %v2007, 0.0
        %v2181 = vmax.f32 %v2009, 0.0
        %v2182 = vmax.f32 %v2011, 0.0
        %v2183 = vmax.f32 %v2015, 0.0
        %v2184 = vmax.f32 %v2017, 0.0
        %v2185 = vmax.f32 %v2019, 0.0
        %v2186 = vmax.f32 %v2021, 0.0
        %v2187 = vmax.f32 %v2025, 0.0
        %v2188 = vmax.f32 %v2027, 0.0
        %v2189 = vmax.f32 %v2029, 0.0
        %v2190 = vmax.f32 %v2031, 0.0
        %v2191 = vmax.f32 %v2035, 0.0
        %v2192 = vmax.f32 %v2037, 0.0
        %v2193 = vmax.f32 %v2039, 0.0
        %v2194 = vmax.f32 %v2041, 0.0
        %v2195 = vmax.f32 %v2045, 0.0
        %v2196 = vmax.f32 %v2047, 0.0
        %v2197 = vmax.f32 %v2049, 0.0
        %v2198 = vmax.f32 %v2051, 0.0
        %v2199 = vmax.f32 %v2055, 0.0
        %v2200 = vmax.f32 %v2057, 0.0
        %v2201 = vmax.f32 %v2059, 0.0
        %v2202 = vmax.f32 %v2061, 0.0
        %v2203 = vmax.f32 %v2065, 0.0
        %v2204 = vmax.f32 %v2067, 0.0
        %v2205 = vmax.f32 %v2069, 0.0
        %v2206 = vmax.f32 %v2071, 0.0
        %v2207 = vmax.f32 %v2075, 0.0
        %v2208 = vmax.f32 %v2077, 0.0
        %v2209 = vmax.f32 %v2079, 0.0
        %v2210 = vmax.f32 %v2081, 0.0
        %v2211 = vpack.c.bf16 %v2085, %v2083
        %v2212 = vpack.c.bf16 %v2086, %v2084
        %v2213 = vpack.c.bf16 %v2089, %v2087
        %v2214 = vpack.c.bf16 %v2090, %v2088
        %v2215 = vpack.c.bf16 %v2093, %v2091
        %v2216 = vpack.c.bf16 %v2094, %v2092
        %v2217 = vpack.c.bf16 %v2097, %v2095
        %v2218 = vpack.c.bf16 %v2098, %v2096
        %v2219 = vpack.c.bf16 %v2101, %v2099
        %v2220 = vpack.c.bf16 %v2102, %v2100
        %v2221 = vpack.c.bf16 %v2105, %v2103
        %v2222 = vpack.c.bf16 %v2106, %v2104
        %v2223 = vpack.c.bf16 %v2109, %v2107
        %v2224 = vpack.c.bf16 %v2110, %v2108
        %v2225 = vpack.c.bf16 %v2113, %v2111
        %v2226 = vpack.c.bf16 %v2114, %v2112
        %v2227 = vpack.c.bf16 %v2117, %v2115
        %v2228 = vpack.c.bf16 %v2118, %v2116
        %v2229 = vpack.c.bf16 %v2121, %v2119
        %v2230 = vpack.c.bf16 %v2122, %v2120
        %v2231 = vpack.c.bf16 %v2125, %v2123
        %v2232 = vpack.c.bf16 %v2126, %v2124
        %v2233 = vpack.c.bf16 %v2129, %v2127
        %v2234 = vpack.c.bf16 %v2130, %v2128
        %v2235 = vpack.c.bf16 %v2133, %v2131
        %v2236 = vpack.c.bf16 %v2134, %v2132
        %v2237 = vpack.c.bf16 %v2137, %v2135
        %v2238 = vpack.c.bf16 %v2138, %v2136
        %v2239 = vpack.c.bf16 %v2141, %v2139
        %v2240 = vpack.c.bf16 %v2142, %v2140
        %v2241 = vpack.c.bf16 %v2145, %v2143
        %v2242 = vpack.c.bf16 %v2146, %v2144
        %v2243 = vpack.c.bf16 %v2149, %v2147
        %v2244 = vpack.c.bf16 %v2150, %v2148
        %v2245 = vpack.c.bf16 %v2153, %v2151
        %v2246 = vpack.c.bf16 %v2154, %v2152
        %v2247 = vpack.c.bf16 %v2157, %v2155
        %v2248 = vpack.c.bf16 %v2158, %v2156
        %v2249 = vpack.c.bf16 %v2161, %v2159
        %v2250 = vpack.c.bf16 %v2162, %v2160
        %v2251 = vpack.c.bf16 %v2165, %v2163
        %v2252 = vpack.c.bf16 %v2166, %v2164
        %v2253 = vpack.c.bf16 %v2169, %v2167
        %v2254 = vpack.c.bf16 %v2170, %v2168
        %v2255 = vpack.c.bf16 %v2173, %v2171
        %v2256 = vpack.c.bf16 %v2174, %v2172
        %v2257 = vpack.c.bf16 %v2177, %v2175
        %v2258 = vpack.c.bf16 %v2178, %v2176
        %v2259 = vpack.c.bf16 %v2181, %v2179
        %v2260 = vpack.c.bf16 %v2182, %v2180
        %v2261 = vpack.c.bf16 %v2185, %v2183
        %v2262 = vpack.c.bf16 %v2186, %v2184
        %v2263 = vpack.c.bf16 %v2189, %v2187
        %v2264 = vpack.c.bf16 %v2190, %v2188
        %v2265 = vpack.c.bf16 %v2193, %v2191
        %v2266 = vpack.c.bf16 %v2194, %v2192
        %v2267 = vpack.c.bf16 %v2197, %v2195
        %v2268 = vpack.c.bf16 %v2198, %v2196
        %v2269 = vpack.c.bf16 %v2201, %v2199
        %v2270 = vpack.c.bf16 %v2202, %v2200
        %v2271 = vpack.c.bf16 %v2205, %v2203
        %v2272 = vpack.c.bf16 %v2206, %v2204
        %v2273 = vpack.c.bf16 %v2209, %v2207
        %v2274 = vpack.c.bf16 %v2210, %v2208
        %v2275 = vld [vmem:[%s7] sm:$0xff]
        %v2276 = vld [vmem:[%s7 + $0x8] sm:$0xff]
        %v2277 = vld [vmem:[%s7 + $0x10] sm:$0xff]
        %v2278 = vld [vmem:[%s7 + $0x18] sm:$0xff]
        %v2279 = vld [vmem:[%s7 + $0x20] sm:$0xff]
        %v2280 = vld [vmem:[%s7 + $0x28] sm:$0xff]
        %v2281 = vld [vmem:[%s7 + $0x30] sm:$0xff]
        %v2282 = vld [vmem:[%s7 + $0x38] sm:$0xff]
        %v2283 = vld [vmem:[%s7 + $0x40] sm:$0xff]
        %v2284 = vld [vmem:[%s7 + $0x48] sm:$0xff]
        %v2285 = vld [vmem:[%s7 + $0x50] sm:$0xff]
        %v2286 = vld [vmem:[%s7 + $0x58] sm:$0xff]
        %v2287 = vld [vmem:[%s7 + $0x60] sm:$0xff]
        %v2288 = vld [vmem:[%s7 + $0x68] sm:$0xff]
        %v2289 = vld [vmem:[%s7 + $0x70] sm:$0xff]
        %v2290 = vld [vmem:[%s7 + $0x78] sm:$0xff]
        %v2291 = vld [vmem:[%s7 + $0x80] sm:$0xff]
        %v2292 = vld [vmem:[%s7 + $0x88] sm:$0xff]
        %v2293 = vld [vmem:[%s7 + $0x90] sm:$0xff]
        %v2294 = vld [vmem:[%s7 + $0x98] sm:$0xff]
        %v2295 = vld [vmem:[%s7 + $0xa0] sm:$0xff]
        %v2296 = vld [vmem:[%s7 + $0xa8] sm:$0xff]
        %v2297 = vld [vmem:[%s7 + $0xb0] sm:$0xff]
        %v2298 = vld [vmem:[%s7 + $0xb8] sm:$0xff]
        %v2299 = vld [vmem:[%s7 + $0xc0] sm:$0xff]
        %v2300 = vld [vmem:[%s7 + $0xc8] sm:$0xff]
        %v2301 = vld [vmem:[%s7 + $0xd0] sm:$0xff]
        %v2302 = vld [vmem:[%s7 + $0xd8] sm:$0xff]
        %v2303 = vld [vmem:[%s7 + $0xe0] sm:$0xff]
        %v2304 = vld [vmem:[%s7 + $0xe8] sm:$0xff]
        %v2305 = vld [vmem:[%s7 + $0xf0] sm:$0xff]
        %v2306 = vld [vmem:[%s7 + $0xf8] sm:$0xff]
        %v2307 = vld [vmem:[%s8] sm:$0x3]
        %v2309 = vlaneseq
        %v2310 = vshrl.u32 %v2309, 7
        %v2311 = vsub.s32 0, %v2310
        %v2312 = vrot.slane %v2307, %v2311
        %v2313 = vlaneseq
        %v2314 = vshrl.u32 %v2313, 7
        %v2315 = vsub.s32 1, %v2314
        %v2316 = vrot.slane %v2307, %v2315
        %v2351 = vunpack.c.l.b16 %v2275
        %v2352 = vunpack.c.h.b16 %v2275
        %v2353 = vunpack.c.l.b16 %v2276
        %v2354 = vunpack.c.h.b16 %v2276
        %v2355 = vunpack.c.l.b16 %v2277
        %v2356 = vunpack.c.h.b16 %v2277
        %v2357 = vunpack.c.l.b16 %v2278
        %v2358 = vunpack.c.h.b16 %v2278
        %v2359 = vunpack.c.l.b16 %v2279
        %v2360 = vunpack.c.h.b16 %v2279
        %v2361 = vunpack.c.l.b16 %v2280
        %v2362 = vunpack.c.h.b16 %v2280
        %v2363 = vunpack.c.l.b16 %v2281
        %v2364 = vunpack.c.h.b16 %v2281
        %v2365 = vunpack.c.l.b16 %v2282
        %v2366 = vunpack.c.h.b16 %v2282
        %v2367 = vunpack.c.l.b16 %v2283
        %v2368 = vunpack.c.h.b16 %v2283
        %v2369 = vunpack.c.l.b16 %v2284
        %v2370 = vunpack.c.h.b16 %v2284
        %v2371 = vunpack.c.l.b16 %v2285
        %v2372 = vunpack.c.h.b16 %v2285
        %v2373 = vunpack.c.l.b16 %v2286
        %v2374 = vunpack.c.h.b16 %v2286
        %v2375 = vunpack.c.l.b16 %v2287
        %v2376 = vunpack.c.h.b16 %v2287
        %v2377 = vunpack.c.l.b16 %v2288
        %v2378 = vunpack.c.h.b16 %v2288
        %v2379 = vunpack.c.l.b16 %v2289
        %v2380 = vunpack.c.h.b16 %v2289
        %v2381 = vunpack.c.l.b16 %v2290
        %v2382 = vunpack.c.h.b16 %v2290
        %v2383 = vunpack.c.l.b16 %v2291
        %v2384 = vunpack.c.h.b16 %v2291
        %v2385 = vunpack.c.l.b16 %v2292
        %v2386 = vunpack.c.h.b16 %v2292
        %v2387 = vunpack.c.l.b16 %v2293
        %v2388 = vunpack.c.h.b16 %v2293
        %v2389 = vunpack.c.l.b16 %v2294
        %v2390 = vunpack.c.h.b16 %v2294
        %v2391 = vunpack.c.l.b16 %v2295
        %v2392 = vunpack.c.h.b16 %v2295
        %v2393 = vunpack.c.l.b16 %v2296
        %v2394 = vunpack.c.h.b16 %v2296
        %v2395 = vunpack.c.l.b16 %v2297
        %v2396 = vunpack.c.h.b16 %v2297
        %v2397 = vunpack.c.l.b16 %v2298
        %v2398 = vunpack.c.h.b16 %v2298
        %v2399 = vunpack.c.l.b16 %v2299
        %v2400 = vunpack.c.h.b16 %v2299
        %v2401 = vunpack.c.l.b16 %v2300
        %v2402 = vunpack.c.h.b16 %v2300
        %v2403 = vunpack.c.l.b16 %v2301
        %v2404 = vunpack.c.h.b16 %v2301
        %v2405 = vunpack.c.l.b16 %v2302
        %v2406 = vunpack.c.h.b16 %v2302
        %v2407 = vunpack.c.l.b16 %v2303
        %v2408 = vunpack.c.h.b16 %v2303
        %v2409 = vunpack.c.l.b16 %v2304
        %v2410 = vunpack.c.h.b16 %v2304
        %v2411 = vunpack.c.l.b16 %v2305
        %v2412 = vunpack.c.h.b16 %v2305
        %v2413 = vunpack.c.l.b16 %v2306
        %v2414 = vunpack.c.h.b16 %v2306
        %v2415 = vpack.c.b16 %v2353, %v2351
        %v2416 = vpack.c.b16 %v2354, %v2352
        %v2417 = vpack.c.b16 %v2357, %v2355
        %v2418 = vpack.c.b16 %v2358, %v2356
        %v2419 = vpack.c.b16 %v2361, %v2359
        %v2420 = vpack.c.b16 %v2362, %v2360
        %v2421 = vpack.c.b16 %v2365, %v2363
        %v2422 = vpack.c.b16 %v2366, %v2364
        %v2423 = vpack.c.b16 %v2369, %v2367
        %v2424 = vpack.c.b16 %v2370, %v2368
        %v2425 = vpack.c.b16 %v2373, %v2371
        %v2426 = vpack.c.b16 %v2374, %v2372
        %v2427 = vpack.c.b16 %v2377, %v2375
        %v2428 = vpack.c.b16 %v2378, %v2376
        %v2429 = vpack.c.b16 %v2381, %v2379
        %v2430 = vpack.c.b16 %v2382, %v2380
        %v2431 = vpack.c.b16 %v2385, %v2383
        %v2432 = vpack.c.b16 %v2386, %v2384
        %v2433 = vpack.c.b16 %v2389, %v2387
        %v2434 = vpack.c.b16 %v2390, %v2388
        %v2435 = vpack.c.b16 %v2393, %v2391
        %v2436 = vpack.c.b16 %v2394, %v2392
        %v2437 = vpack.c.b16 %v2397, %v2395
        %v2438 = vpack.c.b16 %v2398, %v2396
        %v2439 = vpack.c.b16 %v2401, %v2399
        %v2440 = vpack.c.b16 %v2402, %v2400
        %v2441 = vpack.c.b16 %v2405, %v2403
        %v2442 = vpack.c.b16 %v2406, %v2404
        %v2443 = vpack.c.b16 %v2409, %v2407
        %v2444 = vpack.c.b16 %v2410, %v2408
        %v2445 = vpack.c.b16 %v2413, %v2411
        %v2446 = vpack.c.b16 %v2414, %v2412
        %2479 = vmatprep.subr.bf16.mxu0 %v2416
        %2480 = vmatpush1.bf16.msra.mxu0 %v2415
        %2481 = vmatprep.subr.bf16.mxu0 %v2418
        %2482 = vmatpush1.bf16.msra.mxu0 %v2417
        %2483 = vmatprep.subr.bf16.mxu0 %v2420
        %2484 = vmatpush1.bf16.msra.mxu0 %v2419
        %2485 = vmatprep.subr.bf16.mxu0 %v2422
        %2486 = vmatpush1.bf16.msra.mxu0 %v2421
        %2487 = vmatprep.subr.bf16.mxu0 %v2424
        %2488 = vmatpush1.bf16.msra.mxu0 %v2423
        %2489 = vmatprep.subr.bf16.mxu0 %v2426
        %2490 = vmatpush1.bf16.msra.mxu0 %v2425
        %2491 = vmatprep.subr.bf16.mxu0 %v2428
        %2492 = vmatpush1.bf16.msra.mxu0 %v2427
        %2493 = vmatprep.subr.bf16.mxu0 %v2430
        %2494 = vmatpush1.bf16.msra.mxu0 %v2429
        %2495 = vmatprep.subr.bf16.mxu0 %v2432
        %2496 = vmatpush1.bf16.msra.mxu0 %v2431
        %2497 = vmatprep.subr.bf16.mxu0 %v2434
        %2498 = vmatpush1.bf16.msra.mxu0 %v2433
        %2499 = vmatprep.subr.bf16.mxu0 %v2436
        %2500 = vmatpush1.bf16.msra.mxu0 %v2435
        %2501 = vmatprep.subr.bf16.mxu0 %v2438
        %2502 = vmatpush1.bf16.msra.mxu0 %v2437
        %2503 = vmatprep.subr.bf16.mxu0 %v2440
        %2504 = vmatpush1.bf16.msra.mxu0 %v2439
        %2505 = vmatprep.subr.bf16.mxu0 %v2442
        %2506 = vmatpush1.bf16.msra.mxu0 %v2441
        %2507 = vmatprep.subr.bf16.mxu0 %v2444
        %2508 = vmatpush1.bf16.msra.mxu0 %v2443
        %2509 = vmatprep.subr.bf16.mxu0 %v2446
        %2510 = vmatpush1.bf16.msra.mxu0 %v2445
        %2511 = vmatprep.mubr.bf16.mxu0 %v2212
        %2512 = vmatmul.mubr.bf16.gmra.mrb[0].mxu0 %v2211
        %v2513 = vpop.f32.mrb[0].mxu0
        %v2514 = vadd.f32 %v2312, %v2513
        %v2515 = vpop.f32.mrb[0].mxu0
        %v2516 = vadd.f32 %v2316, %v2515
        %v2517 = vpop.f32.mrb[0].mxu0
        %v2518 = vadd.f32 %v2312, %v2517
        %v2519 = vpop.f32.mrb[0].mxu0
        %v2520 = vadd.f32 %v2316, %v2519
        %2521 = vmatprep.mubr.bf16.mxu0 %v2214
        %2522 = vmatmul.mubr.bf16.gmra.mrb[0].mxu0 %v2213
        %v2523 = vpop.f32.mrb[0].mxu0
        %v2524 = vadd.f32 %v2312, %v2523
        %v2525 = vpop.f32.mrb[0].mxu0
        %v2526 = vadd.f32 %v2316, %v2525
        %v2527 = vpop.f32.mrb[0].mxu0
        %v2528 = vadd.f32 %v2312, %v2527
        %v2529 = vpop.f32.mrb[0].mxu0
        %v2530 = vadd.f32 %v2316, %v2529
        %2531 = vmatprep.mubr.bf16.mxu0 %v2216
        %2532 = vmatmul.mubr.bf16.gmra.mrb[0].mxu0 %v2215
        %v2533 = vpop.f32.mrb[0].mxu0
        %v2534 = vadd.f32 %v2312, %v2533
        %v2535 = vpop.f32.mrb[0].mxu0
        %v2536 = vadd.f32 %v2316, %v2535
        %v2537 = vpop.f32.mrb[0].mxu0
        %v2538 = vadd.f32 %v2312, %v2537
        %v2539 = vpop.f32.mrb[0].mxu0
        %v2540 = vadd.f32 %v2316, %v2539
        %2541 = vmatprep.mubr.bf16.mxu0 %v2218
        %2542 = vmatmul.mubr.bf16.gmra.mrb[0].mxu0 %v2217
        %v2543 = vpop.f32.mrb[0].mxu0
        %v2544 = vadd.f32 %v2312, %v2543
        %v2545 = vpop.f32.mrb[0].mxu0
        %v2546 = vadd.f32 %v2316, %v2545
        %v2547 = vpop.f32.mrb[0].mxu0
        %v2548 = vadd.f32 %v2312, %v2547
        %v2549 = vpop.f32.mrb[0].mxu0
        %v2550 = vadd.f32 %v2316, %v2549
        %2551 = vmatprep.mubr.bf16.mxu0 %v2220
        %2552 = vmatmul.mubr.bf16.gmra.mrb[0].mxu0 %v2219
        %v2553 = vpop.f32.mrb[0].mxu0
        %v2554 = vadd.f32 %v2312, %v2553
        %v2555 = vpop.f32.mrb[0].mxu0
        %v2556 = vadd.f32 %v2316, %v2555
        %v2557 = vpop.f32.mrb[0].mxu0
        %v2558 = vadd.f32 %v2312, %v2557
        %v2559 = vpop.f32.mrb[0].mxu0
        %v2560 = vadd.f32 %v2316, %v2559
        %2561 = vmatprep.mubr.bf16.mxu0 %v2222
        %2562 = vmatmul.mubr.bf16.gmra.mrb[0].mxu0 %v2221
        %v2563 = vpop.f32.mrb[0].mxu0
        %v2564 = vadd.f32 %v2312, %v2563
        %v2565 = vpop.f32.mrb[0].mxu0
        %v2566 = vadd.f32 %v2316, %v2565
        %v2567 = vpop.f32.mrb[0].mxu0
        %v2568 = vadd.f32 %v2312, %v2567
        %v2569 = vpop.f32.mrb[0].mxu0
        %v2570 = vadd.f32 %v2316, %v2569
        %2571 = vmatprep.mubr.bf16.mxu0 %v2224
        %2572 = vmatmul.mubr.bf16.gmra.mrb[0].mxu0 %v2223
        %v2573 = vpop.f32.mrb[0].mxu0
        %v2574 = vadd.f32 %v2312, %v2573
        %v2575 = vpop.f32.mrb[0].mxu0
        %v2576 = vadd.f32 %v2316, %v2575
        %v2577 = vpop.f32.mrb[0].mxu0
        %v2578 = vadd.f32 %v2312, %v2577
        %v2579 = vpop.f32.mrb[0].mxu0
        %v2580 = vadd.f32 %v2316, %v2579
        %2581 = vmatprep.mubr.bf16.mxu0 %v2226
        %2582 = vmatmul.mubr.bf16.gmra.mrb[0].mxu0 %v2225
        %v2583 = vpop.f32.mrb[0].mxu0
        %v2584 = vadd.f32 %v2312, %v2583
        %v2585 = vpop.f32.mrb[0].mxu0
        %v2586 = vadd.f32 %v2316, %v2585
        %v2587 = vpop.f32.mrb[0].mxu0
        %v2588 = vadd.f32 %v2312, %v2587
        %v2589 = vpop.f32.mrb[0].mxu0
        %v2590 = vadd.f32 %v2316, %v2589
        %2591 = vmatprep.mubr.bf16.mxu0 %v2228
        %2592 = vmatmul.mubr.bf16.gmra.mrb[0].mxu0 %v2227
        %v2593 = vpop.f32.mrb[0].mxu0
        %v2594 = vadd.f32 %v2312, %v2593
        %v2595 = vpop.f32.mrb[0].mxu0
        %v2596 = vadd.f32 %v2316, %v2595
        %v2597 = vpop.f32.mrb[0].mxu0
        %v2598 = vadd.f32 %v2312, %v2597
        %v2599 = vpop.f32.mrb[0].mxu0
        %v2600 = vadd.f32 %v2316, %v2599
        %2601 = vmatprep.mubr.bf16.mxu0 %v2230
        %2602 = vmatmul.mubr.bf16.gmra.mrb[0].mxu0 %v2229
        %v2603 = vpop.f32.mrb[0].mxu0
        %v2604 = vadd.f32 %v2312, %v2603
        %v2605 = vpop.f32.mrb[0].mxu0
        %v2606 = vadd.f32 %v2316, %v2605
        %v2607 = vpop.f32.mrb[0].mxu0
        %v2608 = vadd.f32 %v2312, %v2607
        %v2609 = vpop.f32.mrb[0].mxu0
        %v2610 = vadd.f32 %v2316, %v2609
        %2611 = vmatprep.mubr.bf16.mxu0 %v2232
        %2612 = vmatmul.mubr.bf16.gmra.mrb[0].mxu0 %v2231
        %v2613 = vpop.f32.mrb[0].mxu0
        %v2614 = vadd.f32 %v2312, %v2613
        %v2615 = vpop.f32.mrb[0].mxu0
        %v2616 = vadd.f32 %v2316, %v2615
        %v2617 = vpop.f32.mrb[0].mxu0
        %v2618 = vadd.f32 %v2312, %v2617
        %v2619 = vpop.f32.mrb[0].mxu0
        %v2620 = vadd.f32 %v2316, %v2619
        %2621 = vmatprep.mubr.bf16.mxu0 %v2234
        %2622 = vmatmul.mubr.bf16.gmra.mrb[0].mxu0 %v2233
        %v2623 = vpop.f32.mrb[0].mxu0
        %v2624 = vadd.f32 %v2312, %v2623
        %v2625 = vpop.f32.mrb[0].mxu0
        %v2626 = vadd.f32 %v2316, %v2625
        %v2627 = vpop.f32.mrb[0].mxu0
        %v2628 = vadd.f32 %v2312, %v2627
        %v2629 = vpop.f32.mrb[0].mxu0
        %v2630 = vadd.f32 %v2316, %v2629
        %2631 = vmatprep.mubr.bf16.mxu0 %v2236
        %2632 = vmatmul.mubr.bf16.gmra.mrb[0].mxu0 %v2235
        %v2633 = vpop.f32.mrb[0].mxu0
        %v2634 = vadd.f32 %v2312, %v2633
        %v2635 = vpop.f32.mrb[0].mxu0
        %v2636 = vadd.f32 %v2316, %v2635
        %v2637 = vpop.f32.mrb[0].mxu0
        %v2638 = vadd.f32 %v2312, %v2637
        %v2639 = vpop.f32.mrb[0].mxu0
        %v2640 = vadd.f32 %v2316, %v2639
        %2641 = vmatprep.mubr.bf16.mxu0 %v2238
        %2642 = vmatmul.mubr.bf16.gmra.mrb[0].mxu0 %v2237
        %v2643 = vpop.f32.mrb[0].mxu0
        %v2644 = vadd.f32 %v2312, %v2643
        %v2645 = vpop.f32.mrb[0].mxu0
        %v2646 = vadd.f32 %v2316, %v2645
        %v2647 = vpop.f32.mrb[0].mxu0
        %v2648 = vadd.f32 %v2312, %v2647
        %v2649 = vpop.f32.mrb[0].mxu0
        %v2650 = vadd.f32 %v2316, %v2649
        %2651 = vmatprep.mubr.bf16.mxu0 %v2240
        %2652 = vmatmul.mubr.bf16.gmra.mrb[0].mxu0 %v2239
        %v2653 = vpop.f32.mrb[0].mxu0
        %v2654 = vadd.f32 %v2312, %v2653
        %v2655 = vpop.f32.mrb[0].mxu0
        %v2656 = vadd.f32 %v2316, %v2655
        %v2657 = vpop.f32.mrb[0].mxu0
        %v2658 = vadd.f32 %v2312, %v2657
        %v2659 = vpop.f32.mrb[0].mxu0
        %v2660 = vadd.f32 %v2316, %v2659
        %2661 = vmatprep.mubr.bf16.mxu0 %v2242
        %2662 = vmatmul.mubr.bf16.gmra.mrb[0].mxu0 %v2241
        %v2663 = vpop.f32.mrb[0].mxu0
        %v2664 = vadd.f32 %v2312, %v2663
        %v2665 = vpop.f32.mrb[0].mxu0
        %v2666 = vadd.f32 %v2316, %v2665
        %v2667 = vpop.f32.mrb[0].mxu0
        %v2668 = vadd.f32 %v2312, %v2667
        %v2669 = vpop.f32.mrb[0].mxu0
        %v2670 = vadd.f32 %v2316, %v2669
        %2671 = vmatprep.mubr.bf16.mxu0 %v2244
        %2672 = vmatmul.mubr.bf16.gmra.mrb[0].mxu0 %v2243
        %v2673 = vpop.f32.mrb[0].mxu0
        %v2674 = vadd.f32 %v2312, %v2673
        %v2675 = vpop.f32.mrb[0].mxu0
        %v2676 = vadd.f32 %v2316, %v2675
        %v2677 = vpop.f32.mrb[0].mxu0
        %v2678 = vadd.f32 %v2312, %v2677
        %v2679 = vpop.f32.mrb[0].mxu0
        %v2680 = vadd.f32 %v2316, %v2679
        %2681 = vmatprep.mubr.bf16.mxu0 %v2246
        %2682 = vmatmul.mubr.bf16.gmra.mrb[0].mxu0 %v2245
        %v2683 = vpop.f32.mrb[0].mxu0
        %v2684 = vadd.f32 %v2312, %v2683
        %v2685 = vpop.f32.mrb[0].mxu0
        %v2686 = vadd.f32 %v2316, %v2685
        %v2687 = vpop.f32.mrb[0].mxu0
        %v2688 = vadd.f32 %v2312, %v2687
        %v2689 = vpop.f32.mrb[0].mxu0
        %v2690 = vadd.f32 %v2316, %v2689
        %2691 = vmatprep.mubr.bf16.mxu0 %v2248
        %2692 = vmatmul.mubr.bf16.gmra.mrb[0].mxu0 %v2247
        %v2693 = vpop.f32.mrb[0].mxu0
        %v2694 = vadd.f32 %v2312, %v2693
        %v2695 = vpop.f32.mrb[0].mxu0
        %v2696 = vadd.f32 %v2316, %v2695
        %v2697 = vpop.f32.mrb[0].mxu0
        %v2698 = vadd.f32 %v2312, %v2697
        %v2699 = vpop.f32.mrb[0].mxu0
        %v2700 = vadd.f32 %v2316, %v2699
        %2701 = vmatprep.mubr.bf16.mxu0 %v2250
        %2702 = vmatmul.mubr.bf16.gmra.mrb[0].mxu0 %v2249
        %v2703 = vpop.f32.mrb[0].mxu0
        %v2704 = vadd.f32 %v2312, %v2703
        %v2705 = vpop.f32.mrb[0].mxu0
        %v2706 = vadd.f32 %v2316, %v2705
        %v2707 = vpop.f32.mrb[0].mxu0
        %v2708 = vadd.f32 %v2312, %v2707
        %v2709 = vpop.f32.mrb[0].mxu0
        %v2710 = vadd.f32 %v2316, %v2709
        %2711 = vmatprep.mubr.bf16.mxu0 %v2252
        %2712 = vmatmul.mubr.bf16.gmra.mrb[0].mxu0 %v2251
        %v2713 = vpop.f32.mrb[0].mxu0
        %v2714 = vadd.f32 %v2312, %v2713
        %v2715 = vpop.f32.mrb[0].mxu0
        %v2716 = vadd.f32 %v2316, %v2715
        %v2717 = vpop.f32.mrb[0].mxu0
        %v2718 = vadd.f32 %v2312, %v2717
        %v2719 = vpop.f32.mrb[0].mxu0
        %v2720 = vadd.f32 %v2316, %v2719
        %2721 = vmatprep.mubr.bf16.mxu0 %v2254
        %2722 = vmatmul.mubr.bf16.gmra.mrb[0].mxu0 %v2253
        %v2723 = vpop.f32.mrb[0].mxu0
        %v2724 = vadd.f32 %v2312, %v2723
        %v2725 = vpop.f32.mrb[0].mxu0
        %v2726 = vadd.f32 %v2316, %v2725
        %v2727 = vpop.f32.mrb[0].mxu0
        %v2728 = vadd.f32 %v2312, %v2727
        %v2729 = vpop.f32.mrb[0].mxu0
        %v2730 = vadd.f32 %v2316, %v2729
        %2731 = vmatprep.mubr.bf16.mxu0 %v2256
        %2732 = vmatmul.mubr.bf16.gmra.mrb[0].mxu0 %v2255
        %v2733 = vpop.f32.mrb[0].mxu0
        %v2734 = vadd.f32 %v2312, %v2733
        %v2735 = vpop.f32.mrb[0].mxu0
        %v2736 = vadd.f32 %v2316, %v2735
        %v2737 = vpop.f32.mrb[0].mxu0
        %v2738 = vadd.f32 %v2312, %v2737
        %v2739 = vpop.f32.mrb[0].mxu0
        %v2740 = vadd.f32 %v2316, %v2739
        %2741 = vmatprep.mubr.bf16.mxu0 %v2258
        %2742 = vmatmul.mubr.bf16.gmra.mrb[0].mxu0 %v2257
        %v2743 = vpop.f32.mrb[0].mxu0
        %v2744 = vadd.f32 %v2312, %v2743
        %v2745 = vpop.f32.mrb[0].mxu0
        %v2746 = vadd.f32 %v2316, %v2745
        %v2747 = vpop.f32.mrb[0].mxu0
        %v2748 = vadd.f32 %v2312, %v2747
        %v2749 = vpop.f32.mrb[0].mxu0
        %v2750 = vadd.f32 %v2316, %v2749
        %2751 = vmatprep.mubr.bf16.mxu0 %v2260
        %2752 = vmatmul.mubr.bf16.gmra.mrb[0].mxu0 %v2259
        %v2753 = vpop.f32.mrb[0].mxu0
        %v2754 = vadd.f32 %v2312, %v2753
        %v2755 = vpop.f32.mrb[0].mxu0
        %v2756 = vadd.f32 %v2316, %v2755
        %v2757 = vpop.f32.mrb[0].mxu0
        %v2758 = vadd.f32 %v2312, %v2757
        %v2759 = vpop.f32.mrb[0].mxu0
        %v2760 = vadd.f32 %v2316, %v2759
        %2761 = vmatprep.mubr.bf16.mxu0 %v2262
        %2762 = vmatmul.mubr.bf16.gmra.mrb[0].mxu0 %v2261
        %v2763 = vpop.f32.mrb[0].mxu0
        %v2764 = vadd.f32 %v2312, %v2763
        %v2765 = vpop.f32.mrb[0].mxu0
        %v2766 = vadd.f32 %v2316, %v2765
        %v2767 = vpop.f32.mrb[0].mxu0
        %v2768 = vadd.f32 %v2312, %v2767
        %v2769 = vpop.f32.mrb[0].mxu0
        %v2770 = vadd.f32 %v2316, %v2769
        %2771 = vmatprep.mubr.bf16.mxu0 %v2264
        %2772 = vmatmul.mubr.bf16.gmra.mrb[0].mxu0 %v2263
        %v2773 = vpop.f32.mrb[0].mxu0
        %v2774 = vadd.f32 %v2312, %v2773
        %v2775 = vpop.f32.mrb[0].mxu0
        %v2776 = vadd.f32 %v2316, %v2775
        %v2777 = vpop.f32.mrb[0].mxu0
        %v2778 = vadd.f32 %v2312, %v2777
        %v2779 = vpop.f32.mrb[0].mxu0
        %v2780 = vadd.f32 %v2316, %v2779
        %2781 = vmatprep.mubr.bf16.mxu0 %v2266
        %2782 = vmatmul.mubr.bf16.gmra.mrb[0].mxu0 %v2265
        %v2783 = vpop.f32.mrb[0].mxu0
        %v2784 = vadd.f32 %v2312, %v2783
        %v2785 = vpop.f32.mrb[0].mxu0
        %v2786 = vadd.f32 %v2316, %v2785
        %v2787 = vpop.f32.mrb[0].mxu0
        %v2788 = vadd.f32 %v2312, %v2787
        %v2789 = vpop.f32.mrb[0].mxu0
        %v2790 = vadd.f32 %v2316, %v2789
        %2791 = vmatprep.mubr.bf16.mxu0 %v2268
        %2792 = vmatmul.mubr.bf16.gmra.mrb[0].mxu0 %v2267
        %v2793 = vpop.f32.mrb[0].mxu0
        %v2794 = vadd.f32 %v2312, %v2793
        %v2795 = vpop.f32.mrb[0].mxu0
        %v2796 = vadd.f32 %v2316, %v2795
        %v2797 = vpop.f32.mrb[0].mxu0
        %v2798 = vadd.f32 %v2312, %v2797
        %v2799 = vpop.f32.mrb[0].mxu0
        %v2800 = vadd.f32 %v2316, %v2799
        %2801 = vmatprep.mubr.bf16.mxu0 %v2270
        %2802 = vmatmul.mubr.bf16.gmra.mrb[0].mxu0 %v2269
        %v2803 = vpop.f32.mrb[0].mxu0
        %v2804 = vadd.f32 %v2312, %v2803
        %v2805 = vpop.f32.mrb[0].mxu0
        %v2806 = vadd.f32 %v2316, %v2805
        %v2807 = vpop.f32.mrb[0].mxu0
        %v2808 = vadd.f32 %v2312, %v2807
        %v2809 = vpop.f32.mrb[0].mxu0
        %v2810 = vadd.f32 %v2316, %v2809
        %2811 = vmatprep.mubr.bf16.mxu0 %v2272
        %2812 = vmatmul.mubr.bf16.gmra.mrb[0].mxu0 %v2271
        %v2813 = vpop.f32.mrb[0].mxu0
        %v2814 = vadd.f32 %v2312, %v2813
        %v2815 = vpop.f32.mrb[0].mxu0
        %v2816 = vadd.f32 %v2316, %v2815
        %v2817 = vpop.f32.mrb[0].mxu0
        %v2818 = vadd.f32 %v2312, %v2817
        %v2819 = vpop.f32.mrb[0].mxu0
        %v2820 = vadd.f32 %v2316, %v2819
        %2821 = vmatprep.mubr.bf16.mxu0 %v2274
        %2822 = vmatmul.mubr.bf16.gmra.mrb[0].mxu0 %v2273
        %v2823 = vpop.f32.mrb[0].mxu0
        %v2824 = vadd.f32 %v2312, %v2823
        %v2825 = vpop.f32.mrb[0].mxu0
        %v2826 = vadd.f32 %v2316, %v2825
        %v2827 = vpop.f32.mrb[0].mxu0
        %v2828 = vadd.f32 %v2312, %v2827
        %v2829 = vpop.f32.mrb[0].mxu0
        %v2830 = vadd.f32 %v2316, %v2829
        %2831 = vdwg.mxu0
        %v2832 = vmax.f32 %v2514, 0.0
        %v2833 = vmax.f32 %v2516, 0.0
        %v2834 = vmax.f32 %v2518, 0.0
        %v2835 = vmax.f32 %v2520, 0.0
        %v2836 = vmax.f32 %v2524, 0.0
        %v2837 = vmax.f32 %v2526, 0.0
        %v2838 = vmax.f32 %v2528, 0.0
        %v2839 = vmax.f32 %v2530, 0.0
        %v2840 = vmax.f32 %v2534, 0.0
        %v2841 = vmax.f32 %v2536, 0.0
        %v2842 = vmax.f32 %v2538, 0.0
        %v2843 = vmax.f32 %v2540, 0.0
        %v2844 = vmax.f32 %v2544, 0.0
        %v2845 = vmax.f32 %v2546, 0.0
        %v2846 = vmax.f32 %v2548, 0.0
        %v2847 = vmax.f32 %v2550, 0.0
        %v2848 = vmax.f32 %v2554, 0.0
        %v2849 = vmax.f32 %v2556, 0.0
        %v2850 = vmax.f32 %v2558, 0.0
        %v2851 = vmax.f32 %v2560, 0.0
        %v2852 = vmax.f32 %v2564, 0.0
        %v2853 = vmax.f32 %v2566, 0.0
        %v2854 = vmax.f32 %v2568, 0.0
        %v2855 = vmax.f32 %v2570, 0.0
        %v2856 = vmax.f32 %v2574, 0.0
        %v2857 = vmax.f32 %v2576, 0.0
        %v2858 = vmax.f32 %v2578, 0.0
        %v2859 = vmax.f32 %v2580, 0.0
        %v2860 = vmax.f32 %v2584, 0.0
        %v2861 = vmax.f32 %v2586, 0.0
        %v2862 = vmax.f32 %v2588, 0.0
        %v2863 = vmax.f32 %v2590, 0.0
        %v2864 = vmax.f32 %v2594, 0.0
        %v2865 = vmax.f32 %v2596, 0.0
        %v2866 = vmax.f32 %v2598, 0.0
        %v2867 = vmax.f32 %v2600, 0.0
        %v2868 = vmax.f32 %v2604, 0.0
        %v2869 = vmax.f32 %v2606, 0.0
        %v2870 = vmax.f32 %v2608, 0.0
        %v2871 = vmax.f32 %v2610, 0.0
        %v2872 = vmax.f32 %v2614, 0.0
        %v2873 = vmax.f32 %v2616, 0.0
        %v2874 = vmax.f32 %v2618, 0.0
        %v2875 = vmax.f32 %v2620, 0.0
        %v2876 = vmax.f32 %v2624, 0.0
        %v2877 = vmax.f32 %v2626, 0.0
        %v2878 = vmax.f32 %v2628, 0.0
        %v2879 = vmax.f32 %v2630, 0.0
        %v2880 = vmax.f32 %v2634, 0.0
        %v2881 = vmax.f32 %v2636, 0.0
        %v2882 = vmax.f32 %v2638, 0.0
        %v2883 = vmax.f32 %v2640, 0.0
        %v2884 = vmax.f32 %v2644, 0.0
        %v2885 = vmax.f32 %v2646, 0.0
        %v2886 = vmax.f32 %v2648, 0.0
        %v2887 = vmax.f32 %v2650, 0.0
        %v2888 = vmax.f32 %v2654, 0.0
        %v2889 = vmax.f32 %v2656, 0.0
        %v2890 = vmax.f32 %v2658, 0.0
        %v2891 = vmax.f32 %v2660, 0.0
        %v2892 = vmax.f32 %v2664, 0.0
        %v2893 = vmax.f32 %v2666, 0.0
        %v2894 = vmax.f32 %v2668, 0.0
        %v2895 = vmax.f32 %v2670, 0.0
        %v2896 = vmax.f32 %v2674, 0.0
        %v2897 = vmax.f32 %v2676, 0.0
        %v2898 = vmax.f32 %v2678, 0.0
        %v2899 = vmax.f32 %v2680, 0.0
        %v2900 = vmax.f32 %v2684, 0.0
        %v2901 = vmax.f32 %v2686, 0.0
        %v2902 = vmax.f32 %v2688, 0.0
        %v2903 = vmax.f32 %v2690, 0.0
        %v2904 = vmax.f32 %v2694, 0.0
        %v2905 = vmax.f32 %v2696, 0.0
        %v2906 = vmax.f32 %v2698, 0.0
        %v2907 = vmax.f32 %v2700, 0.0
        %v2908 = vmax.f32 %v2704, 0.0
        %v2909 = vmax.f32 %v2706, 0.0
        %v2910 = vmax.f32 %v2708, 0.0
        %v2911 = vmax.f32 %v2710, 0.0
        %v2912 = vmax.f32 %v2714, 0.0
        %v2913 = vmax.f32 %v2716, 0.0
        %v2914 = vmax.f32 %v2718, 0.0
        %v2915 = vmax.f32 %v2720, 0.0
        %v2916 = vmax.f32 %v2724, 0.0
        %v2917 = vmax.f32 %v2726, 0.0
        %v2918 = vmax.f32 %v2728, 0.0
        %v2919 = vmax.f32 %v2730, 0.0
        %v2920 = vmax.f32 %v2734, 0.0
        %v2921 = vmax.f32 %v2736, 0.0
        %v2922 = vmax.f32 %v2738, 0.0
        %v2923 = vmax.f32 %v2740, 0.0
        %v2924 = vmax.f32 %v2744, 0.0
        %v2925 = vmax.f32 %v2746, 0.0
        %v2926 = vmax.f32 %v2748, 0.0
        %v2927 = vmax.f32 %v2750, 0.0
        %v2928 = vmax.f32 %v2754, 0.0
        %v2929 = vmax.f32 %v2756, 0.0
        %v2930 = vmax.f32 %v2758, 0.0
        %v2931 = vmax.f32 %v2760, 0.0
        %v2932 = vmax.f32 %v2764, 0.0
        %v2933 = vmax.f32 %v2766, 0.0
        %v2934 = vmax.f32 %v2768, 0.0
        %v2935 = vmax.f32 %v2770, 0.0
        %v2936 = vmax.f32 %v2774, 0.0
        %v2937 = vmax.f32 %v2776, 0.0
        %v2938 = vmax.f32 %v2778, 0.0
        %v2939 = vmax.f32 %v2780, 0.0
        %v2940 = vmax.f32 %v2784, 0.0
        %v2941 = vmax.f32 %v2786, 0.0
        %v2942 = vmax.f32 %v2788, 0.0
        %v2943 = vmax.f32 %v2790, 0.0
        %v2944 = vmax.f32 %v2794, 0.0
        %v2945 = vmax.f32 %v2796, 0.0
        %v2946 = vmax.f32 %v2798, 0.0
        %v2947 = vmax.f32 %v2800, 0.0
        %v2948 = vmax.f32 %v2804, 0.0
        %v2949 = vmax.f32 %v2806, 0.0
        %v2950 = vmax.f32 %v2808, 0.0
        %v2951 = vmax.f32 %v2810, 0.0
        %v2952 = vmax.f32 %v2814, 0.0
        %v2953 = vmax.f32 %v2816, 0.0
        %v2954 = vmax.f32 %v2818, 0.0
        %v2955 = vmax.f32 %v2820, 0.0
        %v2956 = vmax.f32 %v2824, 0.0
        %v2957 = vmax.f32 %v2826, 0.0
        %v2958 = vmax.f32 %v2828, 0.0
        %v2959 = vmax.f32 %v2830, 0.0
        %v2960 = vmax.f32 %v2832, %v2836
        %v2961 = vmax.f32 %v2834, %v2838
        %v2962 = vmax.f32 %v2960, %v2840
        %v2963 = vmax.f32 %v2961, %v2842
        %v2964 = vmax.f32 %v2962, %v2844
        %v2965 = vmax.f32 %v2963, %v2846
        %v2966 = vmax.f32 %v2964, %v2848
        %v2967 = vmax.f32 %v2965, %v2850
        %v2968 = vmax.f32 %v2966, %v2852
        %v2969 = vmax.f32 %v2967, %v2854
        %v2970 = vmax.f32 %v2968, %v2856
        %v2971 = vmax.f32 %v2969, %v2858
        %v2972 = vmax.f32 %v2970, %v2860
        %v2973 = vmax.f32 %v2971, %v2862
        %v2974 = vmax.f32 %v2972, %v2864
        %v2975 = vmax.f32 %v2973, %v2866
        %v2976 = vmax.f32 %v2974, %v2868
        %v2977 = vmax.f32 %v2975, %v2870
        %v2978 = vmax.f32 %v2976, %v2872
        %v2979 = vmax.f32 %v2977, %v2874
        %v2980 = vmax.f32 %v2978, %v2876
        %v2981 = vmax.f32 %v2979, %v2878
        %v2982 = vmax.f32 %v2980, %v2880
        %v2983 = vmax.f32 %v2981, %v2882
        %v2984 = vmax.f32 %v2982, %v2884
        %v2985 = vmax.f32 %v2983, %v2886
        %v2986 = vmax.f32 %v2984, %v2888
        %v2987 = vmax.f32 %v2985, %v2890
        %v2988 = vmax.f32 %v2986, %v2892
        %v2989 = vmax.f32 %v2987, %v2894
        %v2990 = vmax.f32 %v2988, %v2896
        %v2991 = vmax.f32 %v2989, %v2898
        %v2992 = vmax.f32 %v2990, %v2900
        %v2993 = vmax.f32 %v2991, %v2902
        %v2994 = vmax.f32 %v2992, %v2904
        %v2995 = vmax.f32 %v2993, %v2906
        %v2996 = vmax.f32 %v2994, %v2908
        %v2997 = vmax.f32 %v2995, %v2910
        %v2998 = vmax.f32 %v2996, %v2912
        %v2999 = vmax.f32 %v2997, %v2914
        %v3000 = vmax.f32 %v2998, %v2916
        %v3001 = vmax.f32 %v2999, %v2918
        %v3002 = vmax.f32 %v3000, %v2920
        %v3003 = vmax.f32 %v3001, %v2922
        %v3004 = vmax.f32 %v3002, %v2924
        %v3005 = vmax.f32 %v3003, %v2926
        %v3006 = vmax.f32 %v3004, %v2928
        %v3007 = vmax.f32 %v3005, %v2930
        %v3008 = vmax.f32 %v3006, %v2932
        %v3009 = vmax.f32 %v3007, %v2934
        %v3010 = vmax.f32 %v3008, %v2936
        %v3011 = vmax.f32 %v3009, %v2938
        %v3012 = vmax.f32 %v3010, %v2940
        %v3013 = vmax.f32 %v3011, %v2942
        %v3014 = vmax.f32 %v3012, %v2944
        %v3015 = vmax.f32 %v3013, %v2946
        %v3016 = vmax.f32 %v3014, %v2948
        %v3017 = vmax.f32 %v3015, %v2950
        %v3018 = vmax.f32 %v3016, %v2952
        %v3019 = vmax.f32 %v3017, %v2954
        %v3020 = vmax.f32 %v3018, %v2956
        %v3021 = vmax.f32 %v3019, %v2958
        %v3022 = vmax.f32 %v3020, %v3021
        %v3023 = vmax.f32 %v2833, %v2837
        %v3024 = vmax.f32 %v2835, %v2839
        %v3025 = vmax.f32 %v3023, %v2841
        %v3026 = vmax.f32 %v3024, %v2843
        %v3027 = vmax.f32 %v3025, %v2845
        %v3028 = vmax.f32 %v3026, %v2847
        %v3029 = vmax.f32 %v3027, %v2849
        %v3030 = vmax.f32 %v3028, %v2851
        %v3031 = vmax.f32 %v3029, %v2853
        %v3032 = vmax.f32 %v3030, %v2855
        %v3033 = vmax.f32 %v3031, %v2857
        %v3034 = vmax.f32 %v3032, %v2859
        %v3035 = vmax.f32 %v3033, %v2861
        %v3036 = vmax.f32 %v3034, %v2863
        %v3037 = vmax.f32 %v3035, %v2865
        %v3038 = vmax.f32 %v3036, %v2867
        %v3039 = vmax.f32 %v3037, %v2869
        %v3040 = vmax.f32 %v3038, %v2871
        %v3041 = vmax.f32 %v3039, %v2873
        %v3042 = vmax.f32 %v3040, %v2875
        %v3043 = vmax.f32 %v3041, %v2877
        %v3044 = vmax.f32 %v3042, %v2879
        %v3045 = vmax.f32 %v3043, %v2881
        %v3046 = vmax.f32 %v3044, %v2883
        %v3047 = vmax.f32 %v3045, %v2885
        %v3048 = vmax.f32 %v3046, %v2887
        %v3049 = vmax.f32 %v3047, %v2889
        %v3050 = vmax.f32 %v3048, %v2891
        %v3051 = vmax.f32 %v3049, %v2893
        %v3052 = vmax.f32 %v3050, %v2895
        %v3053 = vmax.f32 %v3051, %v2897
        %v3054 = vmax.f32 %v3052, %v2899
        %v3055 = vmax.f32 %v3053, %v2901
        %v3056 = vmax.f32 %v3054, %v2903
        %v3057 = vmax.f32 %v3055, %v2905
        %v3058 = vmax.f32 %v3056, %v2907
        %v3059 = vmax.f32 %v3057, %v2909
        %v3060 = vmax.f32 %v3058, %v2911
        %v3061 = vmax.f32 %v3059, %v2913
        %v3062 = vmax.f32 %v3060, %v2915
        %v3063 = vmax.f32 %v3061, %v2917
        %v3064 = vmax.f32 %v3062, %v2919
        %v3065 = vmax.f32 %v3063, %v2921
        %v3066 = vmax.f32 %v3064, %v2923
        %v3067 = vmax.f32 %v3065, %v2925
        %v3068 = vmax.f32 %v3066, %v2927
        %v3069 = vmax.f32 %v3067, %v2929
        %v3070 = vmax.f32 %v3068, %v2931
        %v3071 = vmax.f32 %v3069, %v2933
        %v3072 = vmax.f32 %v3070, %v2935
        %v3073 = vmax.f32 %v3071, %v2937
        %v3074 = vmax.f32 %v3072, %v2939
        %v3075 = vmax.f32 %v3073, %v2941
        %v3076 = vmax.f32 %v3074, %v2943
        %v3077 = vmax.f32 %v3075, %v2945
        %v3078 = vmax.f32 %v3076, %v2947
        %v3079 = vmax.f32 %v3077, %v2949
        %v3080 = vmax.f32 %v3078, %v2951
        %v3081 = vmax.f32 %v3079, %v2953
        %v3082 = vmax.f32 %v3080, %v2955
        %v3083 = vmax.f32 %v3081, %v2957
        %v3084 = vmax.f32 %v3082, %v2959
        %v3085 = vmax.f32 %v3083, %v3084
        %p3086 = scmp.eq.s32.totalorder %s30, 0
        // Predicated region
        $region57: #{tpu_custom_call.1} parent=55 // pred_check
          %p3087 = pneg %p3086
        $region58: #{tpu_custom_call.1} parent=55 // pred_check_branch
          %3089 = sbr.rel (%p3087) target = $region60
        $region59: #{tpu_custom_call.1} parent=55 // pred_region
          %3090 = vst [vmem:[%s367] sm:$0xff] 0.0
          %3091 = vst [vmem:[%s367 + $0x8] sm:$0xff] 0.0
        $region60: #{tpu_custom_call.1} parent=55 // pred_fallthru
          _
        %v3092 = vld [vmem:[%s367] sm:$0xff]
        %v3093 = vld [vmem:[%s367 + $0x8] sm:$0xff]
        %v3094 = vmax.f32 %v3092, %v3022
        %v3095 = vmax.f32 %v3093, %v3085
        %3096 = vst [vmem:[%s367] sm:$0xff] %v3094
        %3097 = vst [vmem:[%s367 + $0x8] sm:$0xff] %v3095
        %s3098 = sand.u32 %s252, 1
        %s3099 = scalar_lea.sflag [#allocation3], %s3098
        %s3100 = sand.u32 %s252, 1
        %s3101 = smul.addr %s3100, 16
        %s3102 = scalar_lea.vmem [#allocation2], %s3101
        // Predicated region
        $region61: #{tpu_custom_call.1} parent=55 // pred_check
          %p3103 = pneg %p262
        $region62: #{tpu_custom_call.1} parent=55 // pred_check_branch
          %3105 = sbr.rel (%p3103) target = $region64
        $region63: #{tpu_custom_call.1} parent=55 // pred_region
          %s3107 = ssub.s32 256, 256
          %3108 = vsyncadd %s3099, %s3107
          %s3109 = smul.addr %s29, 2
          %s3110 = smul.addr %s28, 4
          %s3111 = sadd.s32 %s3109, %s3110
          %s3112 = smul.addr %s3111, 128
          %s3113 = scalar_lea.hbm %s9, %s3112
          %s3115 = sshll.u32 %s3102, 4
          %s3116 = int_to_ptr.vmem [resolvable:$true] %s3115
          %3118 = dma.vmem_to_hbm [thread:$0]  %s3116, 256, %s3113, %s3099
        $region64: #{tpu_custom_call.1} parent=55 // pred_fallthru
          _
      $region56: #{tpu_custom_call.1} parent=5 // pred_fallthru
        _
      %p3119 = scmp.le.s32.totalorder 2, %s18
      // Predicated region
      $region65: #{tpu_custom_call.1} parent=5 // pred_check
        %p3120 = pneg %p3119
      $region66: #{tpu_custom_call.1} parent=5 // pred_check_branch
        %3122 = sbr.rel (%p3120) target = $region68
      $region67: #{tpu_custom_call.1} parent=5 // pred_region
        %s3123 = ssub.s32 %s18, 2
        // Predicated region
        $region69: #{tpu_custom_call.1} parent=67 // pred_check
          %p3124 = pneg %p268
        $region70: #{tpu_custom_call.1} parent=67 // pred_check_branch
          %3126 = sbr.rel (%p3124) target = $region72
        $region71: #{tpu_custom_call.1} parent=67 // pred_region
          %s3127 = sand.u32 %s253, 1
          %s3128 = scalar_lea.sflag [#allocation3], %s3127
          %s3129 = sand.u32 %s253, 1
          %s3130 = smul.addr %s3129, 16
          %s3131 = scalar_lea.vmem [#allocation2], %s3130
          %3132 = dma.done %s3128, 256
        $region72: #{tpu_custom_call.1} parent=67 // pred_fallthru
          _
      $region68: #{tpu_custom_call.1} parent=5 // pred_fallthru
        _
    $region6: #{tpu_custom_call.1} parent=1 // loop_footer
      %s22 = sadd.s32 1, %s18
    $region7: #{tpu_custom_call.1} parent=1 // loop_footer_branch
      %17 = sbr.rel target = $region3
    $region8: #{tpu_custom_call.1} parent=1 // loop_exit
      _
    %3133 = vsyncpa [#allocation3], 1
    %s3134 = scalar_lea.sflag [#allocation3], 1
    %3135 = vsyncpa %s3134, 1

</llo_original>
